<compile_context>
chip_gen: v7x
topology: tpu7x:2x2x1
jax: 0.10.0
libtpu: 0.0.40
codegen_flags: <defaults>
</compile_context>

<pallas_src>
import functools
import math

import jax
import jax.numpy as jnp
from jax.experimental import pallas as pl
from jax.experimental.pallas import tpu as pltpu


# --------------------------------- kernel ---------------------------------
def _decoder_pair_kernel(fac_ref, wnq_ref, wgq_ref, wnk_ref, wgk_ref,
                         sol_row_ref, sol_col_ref,
                         logp_ref, lse_ref, *, v_range):
    # fac_ref: (Bb, fs, D) bf16   wnq/wgq/wnk/wgk: (D, D) bf16
    # sol_row: (Bb, fs, 1) f32    sol_col: (Bb, 1, fs) f32
    Bb, fs, D = fac_ref.shape
    fac = fac_ref[...]                                            # bf16

    # graph feature = max over facilities (value-identical in f32; guaranteed lowering)
    g = jnp.max(fac.astype(jnp.float32), axis=1).astype(jnp.bfloat16)     # (Bb, D)

    # folded projections: q = fac @ (Wn^T Wq)*norm + g @ (Wg^T Wq)*norm ; same for k
    fac2 = fac.reshape(Bb * fs, D)                                # tall MXU LHS
    q = jnp.dot(fac2, wnq_ref[...],
                preferred_element_type=jnp.float32).reshape(Bb, fs, D)
    q = q + jnp.dot(g, wgq_ref[...], preferred_element_type=jnp.float32)[:, None, :]
    k = jnp.dot(fac2, wnk_ref[...],
                preferred_element_type=jnp.float32).reshape(Bb, fs, D)
    k = k + jnp.dot(g, wgk_ref[...], preferred_element_type=jnp.float32)[:, None, :]

    # head-summed compat (norm factor already folded into the Q weights)
    compat = jnp.einsum('bqd,bkd->bqk',
                        q.astype(jnp.bfloat16), k.astype(jnp.bfloat16),
                        preferred_element_type=jnp.float32)        # (Bb, fs, fs)
    scaled = jnp.tanh(compat) * v_range

    # mask[i, j] = (facility i in solution) AND (facility j not in solution)
    in_row = sol_row_ref[...] > 0.5                                # (Bb, fs, 1) bool
    in_col = sol_col_ref[...] > 0.5                                # (Bb, 1, fs) bool
    mask = jnp.logical_and(in_row, jnp.logical_not(in_col))        # (Bb, fs, fs)
    neg_inf = jnp.float32(-jnp.inf)
    logits = jnp.where(mask, scaled, neg_inf)

    # fused log-softmax over the flattened fs*fs logits of each instance
    m = jnp.max(jnp.max(logits, axis=2, keepdims=True), axis=1, keepdims=True)  # (Bb,1,1)
    e = jnp.exp(logits - m)                                        # masked -> 0
    s = jnp.sum(jnp.sum(e, axis=2, keepdims=True), axis=1, keepdims=True)        # (Bb,1,1)
    lse = m + jnp.log(s)
    logp_ref[...] = logits - lse
    lse_ref[...] = lse


# ------------------------------ host helpers ------------------------------
def _pack_folded_weights(W_node, W_graph, W_Q_f, W_K_f):
    """Fold node/graph projections and 1/sqrt(key_dim) into concatenated Q/K weights."""
    n_heads, D, kd = W_Q_f.shape
    norm = 1.0 / math.sqrt(kd)
    wn = jnp.asarray(W_node, jnp.float32).T          # x @ wn == Linear_node(x)
    wg = jnp.asarray(W_graph, jnp.float32).T
    wq = jnp.transpose(W_Q_f, (1, 0, 2)).reshape(D, n_heads * kd).astype(jnp.float32)
    wk = jnp.transpose(W_K_f, (1, 0, 2)).reshape(D, n_heads * kd).astype(jnp.float32)
    wnq = (norm * (wn @ wq)).astype(jnp.bfloat16)
    wgq = (norm * (wg @ wq)).astype(jnp.bfloat16)
    wnk = (wn @ wk).astype(jnp.bfloat16)
    wgk = (wg @ wk).astype(jnp.bfloat16)
    return wnq, wgq, wnk, wgk


def _pick_block_b(bs, max_block=8):
    """Largest divisor of bs <= max_block that keeps the grid length >= 2 (v7x: 2 TCs)."""
    best = 1
    for cand in range(1, min(bs, max_block) + 1):
        if bs % cand == 0 and (bs // cand >= 2 or bs == 1):
            best = cand
    return best


def decoder_pair_pallas(facilities_em, solution, W_node, W_graph, W_Q_f, W_K_f,
                        v_range, block_b=None):
    """Fused projection + compat + mask + log-softmax Pallas kernel.

    Returns (log_probs (bs,fs,fs) f32, logsumexp (bs,1,1) f32).
    logits can be reconstructed lazily as log_probs + logsumexp.
    """
    bs, fs, D = facilities_em.shape
    n_heads, in_dim, kd = W_Q_f.shape
    assert in_dim == D and n_heads * kd == D, \
        "module requires input_dim == embed_dim == n_heads*key_dim"

    wnq, wgq, wnk, wgk = _pack_folded_weights(W_node, W_graph, W_Q_f, W_K_f)
    fac_bf = facilities_em.astype(jnp.bfloat16)

    # thin membership vectors; (fs,fs) mask rebuilt in-kernel (saves the mask DMA stream)
    in_sol = jnp.zeros((bs, fs), jnp.float32).at[
        jnp.arange(bs)[:, None], solution].set(1.0)
    sol_row = in_sol[:, :, None]                                   # (bs, fs, 1)
    sol_col = in_sol[:, None, :]                                   # (bs, 1, fs)

    if block_b is None:
        block_b = _pick_block_b(bs)
    assert bs % block_b == 0, "block_b must divide the batch size"
    grid = (bs // block_b,)

    kernel = functools.partial(_decoder_pair_kernel, v_range=float(v_range))

    logp, lse = pl.pallas_call(
        kernel,
        out_shape=(
            jax.ShapeDtypeStruct((bs, fs, fs), jnp.float32),
            jax.ShapeDtypeStruct((bs, 1, 1), jnp.float32),
        ),
        grid=grid,
        in_specs=[
            pl.BlockSpec((block_b, fs, D), lambda b: (b, 0, 0)),   # facilities (bf16)
            pl.BlockSpec((D, D), lambda b: (0, 0)),                # Wn@Wq * norm (resident)
            pl.BlockSpec((D, D), lambda b: (0, 0)),                # Wg@Wq * norm (resident)
            pl.BlockSpec((D, D), lambda b: (0, 0)),                # Wn@Wk       (resident)
            pl.BlockSpec((D, D), lambda b: (0, 0)),                # Wg@Wk       (resident)
            pl.BlockSpec((block_b, fs, 1), lambda b: (b, 0, 0)),   # row membership
            pl.BlockSpec((block_b, 1, fs), lambda b: (b, 0, 0)),   # col membership
        ],
        out_specs=(
            pl.BlockSpec((block_b, fs, fs), lambda b: (b, 0, 0)),  # log_probs
            pl.BlockSpec((block_b, 1, 1), lambda b: (b, 0, 0)),    # logsumexp
        ),
        compiler_params=pltpu.CompilerParams(
            dimension_semantics=("parallel",)),
    )(fac_bf, wnq, wgq, wnk, wgk, sol_row, sol_col)
    return logp, lse


def multihead_decoder_pair_forward(users_em, facilities_em, solution, params, rng_key,
                                   v_range=6.0, fixed_action=None, training=True):
    """JAX/Pallas equivalent of MultiHeadDecoder_pair.forward (N2S path)."""
    del users_em  # only used for its shape in the PyTorch module
    bs, fs, _ = facilities_em.shape

    logp, lse = decoder_pair_pallas(
        facilities_em, solution,
        params["W_node"], params["W_graph"], params["W_Q_f"], params["W_K_f"],
        v_range)

    log_ll = logp.reshape(bs, -1)                     # (bs, fs*fs)

    if fixed_action is not None:
        action_removal = fixed_action[:, :1]
        action_insertion = fixed_action[:, 1:]
        action = action_removal * fs + action_insertion
        action_pair = fixed_action
    else:
        # torch: probs.multinomial(1) -> categorical over the same distribution
        # (log-softmax output is a valid, shift-invariant logits argument).
        action = jax.random.categorical(rng_key, log_ll, axis=-1)[:, None]
        action_removal = action // fs
        action_insertion = action % fs
        action_pair = jnp.concatenate([action_removal, action_insertion], axis=-1)

    if training:
        selected_log_ll = jnp.take_along_axis(log_ll, action, axis=1)
    else:
        selected_log_ll = jnp.zeros((bs, 1), jnp.float32)

    entropy = None  # require_entropy=False path
    aux = (log_ll, lse, action)
    return action_pair, selected_log_ll, entropy, aux


# -------------------- references for the self-test --------------------
def _membership(solution, bs, fs):
    return jnp.zeros((bs, fs), bool).at[jnp.arange(bs)[:, None], solution].set(True)


def _reference_forward_f32(facilities_em, solution, W_node, W_graph, W_Q_f, W_K_f, v_range):
    """Full-precision reference mirroring the PyTorch module exactly."""
    bs, fs, D = facilities_em.shape
    n_heads, _, kd = W_Q_f.shape
    norm = 1.0 / math.sqrt(kd)
    in_sol = _membership(solution, bs, fs)
    bool_mask = in_sol[:, :, None] & (~in_sol)[:, None, :]

    g = jnp.max(facilities_em, axis=1)
    f = facilities_em @ W_node.T + (g @ W_graph.T)[:, None, :]
    f_flat = f.reshape(-1, D)
    Q = jnp.einsum('md,hdk->hmk', f_flat, W_Q_f).reshape(n_heads, bs, fs, kd)
    K = jnp.einsum('md,hdk->hmk', f_flat, W_K_f).reshape(n_heads, bs, fs, kd)
    compat = norm * jnp.einsum('hbik,hbjk->hbij', Q, K)
    compat_pair = jnp.transpose(compat, (1, 2, 3, 0)).sum(-1)
    logits = jnp.where(bool_mask, jnp.tanh(compat_pair) * v_range, -jnp.inf)
    flat = logits.reshape(bs, -1)
    return logits, jax.nn.softmax(flat, -1), jax.nn.log_softmax(flat, -1)


def _reference_emulated(facilities_em, solution, wnq, wgq, wnk, wgk, v_range):
    """Reference mirroring the kernel numerics (folded weights, bf16 MXU operands, f32 accum)."""
    bs, fs, D = facilities_em.shape
    fac = facilities_em.astype(jnp.bfloat16)
    g = jnp.max(fac, axis=1)
    q = (jnp.einsum('bfd,de->bfe', fac, wnq, preferred_element_type=jnp.float32)
         + jnp.einsum('bd,de->be', g, wgq, preferred_element_type=jnp.float32)[:, None, :])
    k = (jnp.einsum('bfd,de->bfe', fac, wnk, preferred_element_type=jnp.float32)
         + jnp.einsum('bd,de->be', g, wgk, preferred_element_type=jnp.float32)[:, None, :])
    compat = jnp.einsum('bqd,bkd->bqk', q.astype(jnp.bfloat16), k.astype(jnp.bfloat16),
                        preferred_element_type=jnp.float32)
    in_sol = _membership(solution, bs, fs)
    bool_mask = in_sol[:, :, None] & (~in_sol)[:, None, :]
    logits = jnp.where(bool_mask, jnp.tanh(compat) * v_range, -jnp.inf)
    flat = logits.reshape(bs, -1)
    return logits, jax.nn.softmax(flat, -1), jax.nn.log_softmax(flat, -1)


if __name__ == "__main__":
    # small but lane-friendly sizes: embed_dim = 128 (=> key_dim = 32), 128 facilities
    bs, us, fs, D, p_size = 2, 8, 128, 128, 16
    n_heads = 4
    key_dim = D // n_heads
    v_range = 6.0

    key = jax.random.PRNGKey(0)
    k_fac, k_usr, k_wn, k_wg, k_wq, k_wk, k_sol, k_sample = jax.random.split(key, 8)

    facilities_em = jax.random.normal(k_fac, (bs, fs, D), dtype=jnp.float32)
    users_em = jax.random.normal(k_usr, (bs, us, D), dtype=jnp.float32)

    stdv_lin = 1.0 / math.sqrt(D)
    W_node = jax.random.uniform(k_wn, (D, D), minval=-stdv_lin, maxval=stdv_lin, dtype=jnp.float32)
    W_graph = jax.random.uniform(k_wg, (D, D), minval=-stdv_lin, maxval=stdv_lin, dtype=jnp.float32)
    stdv_qk = 1.0 / math.sqrt(key_dim)
    W_Q_f = jax.random.uniform(k_wq, (n_heads, D, key_dim), minval=-stdv_qk, maxval=stdv_qk, dtype=jnp.float32)
    W_K_f = jax.random.uniform(k_wk, (n_heads, D, key_dim), minval=-stdv_qk, maxval=stdv_qk, dtype=jnp.float32)

    sol_keys = jax.random.split(k_sol, bs)
    solution = jnp.stack(
        [jax.random.permutation(sol_keys[i], fs)[:p_size] for i in range(bs)]).astype(jnp.int32)

    params = {"W_node": W_node, "W_graph": W_graph, "W_Q_f": W_Q_f, "W_K_f": W_K_f}

    action_pair, selected_log_ll, entropy, (log_ll, lse, action) = \
        multihead_decoder_pair_forward(users_em, facilities_em, solution, params,
                                       k_sample, v_range=v_range)
    selected_log_ll = jax.block_until_ready(selected_log_ll)

    # lazy reconstruction of logits / probs from the single-slab kernel output
    ker_logp3 = log_ll.reshape(bs, fs, fs)
    ker_logits3 = ker_logp3 + lse.reshape(bs, 1, 1)
    ker_probs = jnp.exp(log_ll)

    # --- tight check against the bf16-emulated reference (same numerics as kernel) ---
    wnq, wgq, wnk, wgk = _pack_folded_weights(W_node, W_graph, W_Q_f, W_K_f)
    emu_logits3, emu_probs, emu_logll = _reference_emulated(
        facilities_em, solution, wnq, wgq, wnk, wgk, v_range)

    finite = jnp.isfinite(emu_logits3)
    assert bool(jnp.all(jnp.isfinite(ker_logits3) == finite)), "mask (-inf) positions differ"
    assert jnp.allclose(jnp.where(finite, ker_logits3, 0.0),
                        jnp.where(finite, emu_logits3, 0.0), atol=1e-3, rtol=1e-3), "logits mismatch"
    assert jnp.allclose(ker_probs, emu_probs, atol=1e-4, rtol=1e-2), "probs mismatch"
    assert jnp.allclose(jnp.sum(ker_probs, axis=-1), 1.0, atol=1e-4), "probs don't sum to 1"
    finite_l = jnp.isfinite(emu_logll)
    assert jnp.allclose(jnp.where(finite_l, log_ll, 0.0),
                        jnp.where(finite_l, emu_logll, 0.0), atol=1e-3, rtol=1e-3), "log_softmax mismatch"

    ref_selected = jnp.take_along_axis(emu_logll, action, axis=1)
    assert jnp.allclose(selected_log_ll, ref_selected, atol=1e-3, rtol=1e-3), "selected log-ll mismatch"

    # --- loose sanity check against the full-f32 PyTorch-mirroring reference ---
    # (bf16 MXU operands => relaxed tolerance; catches wrong folding / mask / layout)
    ref_logits3, ref_probs, ref_logll = _reference_forward_f32(
        facilities_em, solution, W_node, W_graph, W_Q_f, W_K_f, v_range)
    finite32 = jnp.isfinite(ref_logits3)
    assert bool(jnp.all(finite == finite32)), "mask pattern differs from f32 reference"
    diff = jnp.abs(jnp.where(finite32, ker_logits3 - ref_logits3, 0.0))
    assert float(diff.max()) < 1.0 and float(diff.mean()) < 0.05, "bf16 drift vs f32 reference too large"

    # --- shape / validity checks ---
    assert action_pair.shape == (bs, 2) and selected_log_ll.shape == (bs, 1)
    in_sol_chk = _membership(solution, bs, fs)
    rem_ok = jnp.take_along_axis(in_sol_chk, action_pair[:, :1], axis=1)
    ins_ok = ~jnp.take_along_axis(in_sol_chk, action_pair[:, 1:], axis=1)
    assert bool(jnp.all(rem_ok)) and bool(jnp.all(ins_ok)), "sampled an invalid masked pair"

    print("KERNEL_OK")
</pallas_src>

<mosaic_0001>
module attributes {stable_mosaic.version = 11 : i64} {
  func.func @_decoder_pair_kernel(%arg0: i32, %arg1: memref<1x128x128xbf16, #tpu.memory_space<vmem>>, %arg2: memref<128x128xbf16, #tpu.memory_space<vmem>>, %arg3: memref<128x128xbf16, #tpu.memory_space<vmem>>, %arg4: memref<128x128xbf16, #tpu.memory_space<vmem>>, %arg5: memref<128x128xbf16, #tpu.memory_space<vmem>>, %arg6: memref<1x128x1xf32, #tpu.memory_space<vmem>>, %arg7: memref<1x1x128xf32, #tpu.memory_space<vmem>>, %arg8: memref<1x128x128xf32, #tpu.memory_space<vmem>>, %arg9: memref<1x1x1xf32, #tpu.memory_space<vmem>>) attributes {dimension_semantics = [#tpu.dimension_semantics<parallel>], iteration_bounds = array<i64: 2>, scalar_prefetch = 0 : i64, scratch_operands = 0 : i64, tpu.core_type = #tpu.core_type<tc>, window_params = [{transform_indices = @transform_0, window_bounds = array<i64: 1, 128, 128>}, {pipeline_mode = #tpu.pipeline_mode<synchronous>, transform_indices = @transform_1, window_bounds = array<i64: 128, 128>}, {pipeline_mode = #tpu.pipeline_mode<synchronous>, transform_indices = @transform_2, window_bounds = array<i64: 128, 128>}, {pipeline_mode = #tpu.pipeline_mode<synchronous>, transform_indices = @transform_3, window_bounds = array<i64: 128, 128>}, {pipeline_mode = #tpu.pipeline_mode<synchronous>, transform_indices = @transform_4, window_bounds = array<i64: 128, 128>}, {transform_indices = @transform_5, window_bounds = array<i64: 1, 128, 1>}, {transform_indices = @transform_6, window_bounds = array<i64: 1, 1, 128>}, {transform_indices = @transform_7, window_bounds = array<i64: 1, 128, 128>}, {transform_indices = @transform_8, window_bounds = array<i64: 1, 1, 1>}]} {
    %c0 = arith.constant 0 : index
    %c0_0 = arith.constant 0 : index
    %c0_1 = arith.constant 0 : index
    %0 = vector.load %arg1[%c0, %c0_0, %c0_1] : memref<1x128x128xbf16, #tpu.memory_space<vmem>>, vector<1x128x128xbf16>
    %1 = arith.extf %0 : vector<1x128x128xbf16> to vector<1x128x128xf32>
    %cst = arith.constant dense<0xFF800000> : vector<1x128xf32>
    %2 = vector.multi_reduction <maximumf>, %1, %cst [1] : vector<1x128x128xf32> to vector<1x128xf32>
    %3 = arith.truncf %2 : vector<1x128xf32> to vector<1x128xbf16>
    %4 = vector.shape_cast %0 : vector<1x128x128xbf16> to vector<128x128xbf16>
    %c0_2 = arith.constant 0 : index
    %c0_3 = arith.constant 0 : index
    %5 = vector.load %arg2[%c0_2, %c0_3] : memref<128x128xbf16, #tpu.memory_space<vmem>>, vector<128x128xbf16>
    %cst_4 = arith.constant dense<0.000000e+00> : vector<128x128xf32>
    %6 = tpu.matmul %4, %5, %cst_4 {dimension_numbers = #tpu.dot_dimension_numbers<[1], [0], [0], [1], [0, 0, 1, 1], [], []>} : vector<128x128xbf16>, vector<128x128xbf16>, vector<128x128xf32> -> vector<128x128xf32>
    %7 = vector.shape_cast %6 : vector<128x128xf32> to vector<1x128x128xf32>
    %c0_5 = arith.constant 0 : index
    %c0_6 = arith.constant 0 : index
    %8 = vector.load %arg3[%c0_5, %c0_6] : memref<128x128xbf16, #tpu.memory_space<vmem>>, vector<128x128xbf16>
    %cst_7 = arith.constant dense<0.000000e+00> : vector<1x128xf32>
    %9 = tpu.matmul %3, %8, %cst_7 {dimension_numbers = #tpu.dot_dimension_numbers<[1], [0], [0], [1], [0, 0, 1, 1], [], []>} : vector<1x128xbf16>, vector<128x128xbf16>, vector<1x128xf32> -> vector<1x128xf32>
    %10 = vector.shape_cast %9 : vector<1x128xf32> to vector<1x1x128xf32>
    %11 = vector.broadcast %10 : vector<1x1x128xf32> to vector<1x128x128xf32>
    %12 = arith.addf %7, %11 : vector<1x128x128xf32>
    %c0_8 = arith.constant 0 : index
    %c0_9 = arith.constant 0 : index
    %13 = vector.load %arg4[%c0_8, %c0_9] : memref<128x128xbf16, #tpu.memory_space<vmem>>, vector<128x128xbf16>
    %cst_10 = arith.constant dense<0.000000e+00> : vector<128x128xf32>
    %14 = tpu.matmul %4, %13, %cst_10 {dimension_numbers = #tpu.dot_dimension_numbers<[1], [0], [0], [1], [0, 0, 1, 1], [], []>} : vector<128x128xbf16>, vector<128x128xbf16>, vector<128x128xf32> -> vector<128x128xf32>
    %15 = vector.shape_cast %14 : vector<128x128xf32> to vector<1x128x128xf32>
    %c0_11 = arith.constant 0 : index
    %c0_12 = arith.constant 0 : index
    %16 = vector.load %arg5[%c0_11, %c0_12] : memref<128x128xbf16, #tpu.memory_space<vmem>>, vector<128x128xbf16>
    %cst_13 = arith.constant dense<0.000000e+00> : vector<1x128xf32>
    %17 = tpu.matmul %3, %16, %cst_13 {dimension_numbers = #tpu.dot_dimension_numbers<[1], [0], [0], [1], [0, 0, 1, 1], [], []>} : vector<1x128xbf16>, vector<128x128xbf16>, vector<1x128xf32> -> vector<1x128xf32>
    %18 = vector.shape_cast %17 : vector<1x128xf32> to vector<1x1x128xf32>
    %19 = vector.broadcast %18 : vector<1x1x128xf32> to vector<1x128x128xf32>
    %20 = arith.addf %15, %19 : vector<1x128x128xf32>
    %21 = arith.truncf %12 : vector<1x128x128xf32> to vector<1x128x128xbf16>
    %22 = arith.truncf %20 : vector<1x128x128xf32> to vector<1x128x128xbf16>
    "tpu.trace_start"() <{level = 10 : i32, message = "bqd,bkd->bqk"}> : () -> ()
    %cst_14 = arith.constant dense<0.000000e+00> : vector<1x128x128xf32>
    %23 = tpu.matmul %21, %22, %cst_14 {dimension_numbers = #tpu.dot_dimension_numbers<[2], [2], [1], [1], [0, 0, 0, 1, 1, 1], [0], [0]>} : vector<1x128x128xbf16>, vector<1x128x128xbf16>, vector<1x128x128xf32> -> vector<1x128x128xf32>
    "tpu.trace_stop"() : () -> ()
    %24 = math.tanh %23 : vector<1x128x128xf32>
    %cst_15 = arith.constant 6.000000e+00 : f32
    %25 = vector.broadcast %cst_15 : f32 to vector<1x128x128xf32>
    %26 = arith.mulf %24, %25 : vector<1x128x128xf32>
    %c0_16 = arith.constant 0 : index
    %c0_17 = arith.constant 0 : index
    %c0_18 = arith.constant 0 : index
    %27 = vector.load %arg6[%c0_16, %c0_17, %c0_18] : memref<1x128x1xf32, #tpu.memory_space<vmem>>, vector<1x128x1xf32>
    %cst_19 = arith.constant 5.000000e-01 : f32
    %28 = vector.broadcast %cst_19 : f32 to vector<1x128x1xf32>
    %29 = arith.cmpf ogt, %27, %28 : vector<1x128x1xf32>
    %c0_20 = arith.constant 0 : index
    %c0_21 = arith.constant 0 : index
    %c0_22 = arith.constant 0 : index
    %30 = vector.load %arg7[%c0_20, %c0_21, %c0_22] : memref<1x1x128xf32, #tpu.memory_space<vmem>>, vector<1x1x128xf32>
    %cst_23 = arith.constant 5.000000e-01 : f32
    %31 = vector.broadcast %cst_23 : f32 to vector<1x1x128xf32>
    %32 = arith.cmpf ogt, %30, %31 : vector<1x1x128xf32>
    %cst_24 = arith.constant dense<true> : vector<1x1x128xi1>
    %33 = arith.xori %32, %cst_24 : vector<1x1x128xi1>
    %34 = vector.broadcast %29 : vector<1x128x1xi1> to vector<1x128x128xi1>
    %35 = vector.broadcast %33 : vector<1x1x128xi1> to vector<1x128x128xi1>
    %36 = arith.andi %34, %35 : vector<1x128x128xi1>
    %cst_25 = arith.constant 0xFF800000 : f32
    %37 = vector.broadcast %cst_25 : f32 to vector<1x128x128xf32>
    %38 = arith.select %36, %26, %37 : vector<1x128x128xi1>, vector<1x128x128xf32>
    %cst_26 = arith.constant dense<0xFF800000> : vector<1x128xf32>
    %39 = vector.multi_reduction <maximumf>, %38, %cst_26 [2] : vector<1x128x128xf32> to vector<1x128xf32>
    %40 = vector.shape_cast %39 : vector<1x128xf32> to vector<1x128x1xf32>
    %cst_27 = arith.constant dense<0xFF800000> : vector<1x1xf32>
    %41 = vector.multi_reduction <maximumf>, %40, %cst_27 [1] : vector<1x128x1xf32> to vector<1x1xf32>
    %42 = vector.shape_cast %41 : vector<1x1xf32> to vector<1x1x1xf32>
    %43 = vector.broadcast %42 : vector<1x1x1xf32> to vector<1x128x128xf32>
    %44 = arith.subf %38, %43 : vector<1x128x128xf32>
    %45 = math.exp %44 : vector<1x128x128xf32>
    %cst_28 = arith.constant dense<0.000000e+00> : vector<1x128xf32>
    %46 = vector.multi_reduction <add>, %45, %cst_28 [2] : vector<1x128x128xf32> to vector<1x128xf32>
    %47 = vector.shape_cast %46 : vector<1x128xf32> to vector<1x128x1xf32>
    %cst_29 = arith.constant dense<0.000000e+00> : vector<1x1xf32>
    %48 = vector.multi_reduction <add>, %47, %cst_29 [1] : vector<1x128x1xf32> to vector<1x1xf32>
    %49 = vector.shape_cast %48 : vector<1x1xf32> to vector<1x1x1xf32>
    %50 = math.log %49 : vector<1x1x1xf32>
    %51 = arith.addf %42, %50 : vector<1x1x1xf32>
    %52 = vector.broadcast %51 : vector<1x1x1xf32> to vector<1x128x128xf32>
    %53 = arith.subf %38, %52 : vector<1x128x128xf32>
    %c0_30 = arith.constant 0 : index
    %c0_31 = arith.constant 0 : index
    %c0_32 = arith.constant 0 : index
    %54 = vector.load %arg8[%c0_30, %c0_31, %c0_32] : memref<1x128x128xf32, #tpu.memory_space<vmem>>, vector<1x128x128xf32>
    tpu.vector_store %arg8[%c0_30, %c0_31, %c0_32], %53 {strides = array<i32>} : memref<1x128x128xf32, #tpu.memory_space<vmem>>, vector<1x128x128xf32>,
    %c0_33 = arith.constant 0 : index
    %c0_34 = arith.constant 0 : index
    %c0_35 = arith.constant 0 : index
    %55 = vector.load %arg9[%c0_33, %c0_34, %c0_35] : memref<1x1x1xf32, #tpu.memory_space<vmem>>, vector<1x1x1xf32>
    tpu.vector_store %arg9[%c0_33, %c0_34, %c0_35], %51 {strides = array<i32>} : memref<1x1x1xf32, #tpu.memory_space<vmem>>, vector<1x1x1xf32>,
    return
  }
  func.func @transform_0(%arg0: i32) -> (i32, i32, i32) {
    %c0_i32 = arith.constant 0 : i32
    %c0_i32_0 = arith.constant 0 : i32
    %c0_i32_1 = arith.constant 0 : i32
    return %arg0, %c0_i32, %c0_i32_0 : i32, i32, i32
  }
  func.func @transform_1(%arg0: i32) -> (i32, i32) {
    %c0_i32 = arith.constant 0 : i32
    %c0_i32_0 = arith.constant 0 : i32
    %c0_i32_1 = arith.constant 0 : i32
    return %c0_i32, %c0_i32_0 : i32, i32
  }
  func.func @transform_2(%arg0: i32) -> (i32, i32) {
    %c0_i32 = arith.constant 0 : i32
    %c0_i32_0 = arith.constant 0 : i32
    %c0_i32_1 = arith.constant 0 : i32
    return %c0_i32, %c0_i32_0 : i32, i32
  }
  func.func @transform_3(%arg0: i32) -> (i32, i32) {
    %c0_i32 = arith.constant 0 : i32
    %c0_i32_0 = arith.constant 0 : i32
    %c0_i32_1 = arith.constant 0 : i32
    return %c0_i32, %c0_i32_0 : i32, i32
  }
  func.func @transform_4(%arg0: i32) -> (i32, i32) {
    %c0_i32 = arith.constant 0 : i32
    %c0_i32_0 = arith.constant 0 : i32
    %c0_i32_1 = arith.constant 0 : i32
    return %c0_i32, %c0_i32_0 : i32, i32
  }
  func.func @transform_5(%arg0: i32) -> (i32, i32, i32) {
    %c0_i32 = arith.constant 0 : i32
    %c0_i32_0 = arith.constant 0 : i32
    %c0_i32_1 = arith.constant 0 : i32
    return %arg0, %c0_i32, %c0_i32_0 : i32, i32, i32
  }
  func.func @transform_6(%arg0: i32) -> (i32, i32, i32) {
    %c0_i32 = arith.constant 0 : i32
    %c0_i32_0 = arith.constant 0 : i32
    %c0_i32_1 = arith.constant 0 : i32
    return %arg0, %c0_i32, %c0_i32_0 : i32, i32, i32
  }
  func.func @transform_7(%arg0: i32) -> (i32, i32, i32) {
    %c0_i32 = arith.constant 0 : i32
    %c0_i32_0 = arith.constant 0 : i32
    %c0_i32_1 = arith.constant 0 : i32
    return %arg0, %c0_i32, %c0_i32_0 : i32, i32, i32
  }
  func.func @transform_8(%arg0: i32) -> (i32, i32, i32) {
    %c0_i32 = arith.constant 0 : i32
    %c0_i32_0 = arith.constant 0 : i32
    %c0_i32_1 = arith.constant 0 : i32
    return %arg0, %c0_i32, %c0_i32_0 : i32, i32, i32
  }
}

</mosaic_0001>

<llo_original>
// kernel: tpu_custom_call.1
$region0: #{tpu_custom_call.1}
  #allocation0 [shape = 'u32[]', space=smem, size = 0x4, offset = 0x4, fixed_abs, tag = 'smem constant byte address 0x4 - core index']
  #allocation1 [shape = 'u32[144,128]{1,0:T(1,128)}', space=vmem, size = 0x12000, scoped, tag = 'internal scratch']
  %s0 = inlined_call_operand.vmem [shape: bf16[2,128,128], index: 0, kind: input, shape index: {}]
  %s1 = inlined_call_operand.vmem [shape: bf16[128,128], index: 1, kind: input, shape index: {}]
  %s2 = inlined_call_operand.vmem [shape: bf16[128,128], index: 2, kind: input, shape index: {}]
  %s3 = inlined_call_operand.hbm [shape: bf16[128,128], index: 3, kind: input, shape index: {}]
  %s4 = inlined_call_operand.hbm [shape: bf16[128,128], index: 4, kind: input, shape index: {}]
  %s5 = inlined_call_operand.vmem [shape: f32[2,128,1], index: 5, kind: input, shape index: {}]
  %s6 = inlined_call_operand.vmem [shape: f32[2,1,128], index: 6, kind: input, shape index: {}]
  %s7 = inlined_call_operand.hbm [shape: f32[2,128,128], index: 7, kind: output, shape index: {0}]
  %s8 = inlined_call_operand.vmem [shape: f32[2,1,1], index: 8, kind: output, shape index: {1}]
  %9 = xla_tuple %s7, %s8
  %s10 = sld [smem:[#allocation0]]
  $region77: #{tpu_custom_call.1} parent=0
    _
  %s12 = ssub.s32 1, %s10
  %s13 = scalar_select 0, %s12, %s10
  $region1: #{tpu_custom_call.1} parent=0
    #allocation2 [shape = 'u8[32768]{0}', space=vmem, size = 0x8000, scoped, tag = 'input window, operand 3, single buffered']
    #allocation3 [shape = 's32[2]{0}', space=sflag, size = 0x8, scoped, tag = 'scoped memory for tpu_custom_call.1']
    #allocation4 [shape = 's32[2]{0}', space=sflag, size = 0x8, scoped, tag = 'scoped memory for tpu_custom_call.1']
    #allocation5 [shape = 'u8[32768]{0}', space=vmem, size = 0x8000, scoped, tag = 'input window, operand 4, single buffered']
    #allocation6 [shape = 's32[1]{0}', space=sflag, size = 0x4, scoped, tag = 'scoped memory for tpu_custom_call.1']
    #allocation7 [shape = 'u8[131072]{0}', space=vmem, size = 0x20000, scoped, tag = 'output window, operand 0']
    %14 = vsyncpa [#allocation3], 0
    %15 = vsyncpa [#allocation6], 0
    %16 = vsyncpa [#allocation4], 0
    %s17 = scalar_lea.sflag [#allocation4], 1
    %18 = vsyncpa %s17, 0
    loop: start=0, step=1, limit=4
    $region2: #{tpu_custom_call.1} parent=1 // loop_pre_header
      _
    $region3: #{tpu_custom_call.1} parent=1 // loop_header
      %s20 = sphi 0, %s24
      %p21 = scmp.ge.s32.totalorder %s20, 4
      %s30 = sphi 0, %s32
      %s33 = sphi 0, %s30
      %s34 = sphi 0, %s33
      %s50 = sphi 0, %s34
      %s54 = sphi 0, %s54
      %s56 = sphi 0, %s54
      %s57 = sphi 0, %s56
      %s71 = sphi 0, %s57
      %s75 = sphi 0, %s75
      %s77 = sphi 0, %s75
      %s78 = sphi 0, %s77
      %s92 = sphi 0, %s78
      %s96 = sphi 0, %s96
      %s98 = sphi 0, %s96
      %s99 = sphi 0, %s98
      %s113 = sphi 0, %s99
      %s117 = sphi 0, %s117
      %s119 = sphi 0, %s117
      %s120 = sphi 0, %s119
      %s134 = sphi 0, %s120
      %s140 = sphi 0, %s142
      %s143 = sphi 0, %s140
      %s144 = sphi 0, %s143
      %s160 = sphi 0, %s144
      %s166 = sphi 0, %s168
      %s169 = sphi 0, %s166
      %s170 = sphi 0, %s169
      %s186 = sphi 0, %s170
      %s192 = sphi 0, %s194
      %s195 = sphi 0, %s192
      %s196 = sphi 0, %s195
      %s212 = sphi 0, %s196
      %s218 = sphi 0, %s220
      %s221 = sphi 0, %s218
      %s222 = sphi 0, %s221
      %s238 = sphi 0, %s222
    $region4: #{tpu_custom_call.1} parent=1 // loop_header_branch
      %23 = sbr.rel (%p21) target = $region8
    $region5: #{tpu_custom_call.1} parent=1 // loop_body
      %s25 = ssub.s32 %s20, 1
      %s26 = ssub.s32 %s20, 2
      %s27 = sadd.s32 %s20, 1
      %s28 = ssub.s32 %s20, %s27
      %p29 = scmp.eq.s32.totalorder %s28, 0
      %s31 = sadd.s32 %s30, 1
      %s32 = scalar_select %p29, %s30, %s31
      %p35 = pneg %p29
      %p36 = scmp.eq.s32.totalorder %s20, 1
      %p37 = por %p35, %p36
      %p38 = scmp.ne.s32.totalorder %s30, %s33
      %p39 = scmp.eq.s32.totalorder %s20, 0
      %p40 = por %p38, %p39
      %p41 = scmp.ne.s32.totalorder %s30, %s33
      %p42 = scmp.eq.s32.totalorder %s25, 1
      %p43 = por %p41, %p42
      %p44 = scmp.ne.s32.totalorder %s33, %s34
      %p45 = scmp.eq.s32.totalorder %s25, 0
      %p46 = por %p44, %p45
      %p47 = scmp.ne.s32.totalorder %s33, %s34
      %p48 = scmp.eq.s32.totalorder %s26, 1
      %p49 = por %p47, %p48
      %p51 = scmp.ne.s32.totalorder %s34, %s50
      %p52 = scmp.eq.s32.totalorder %s26, 0
      %p53 = por %p51, %p52
      %s55 = sadd.s32 %s54, 1
      %p58 = scmp.eq.s32.totalorder %s20, 1
      %p59 = scmp.ne.s32.totalorder %s54, %s56
      %p60 = scmp.eq.s32.totalorder %s20, 0
      %p61 = por %p59, %p60
      %p62 = scmp.ne.s32.totalorder %s54, %s56
      %p63 = scmp.eq.s32.totalorder %s25, 1
      %p64 = por %p62, %p63
      %p65 = scmp.ne.s32.totalorder %s56, %s57
      %p66 = scmp.eq.s32.totalorder %s25, 0
      %p67 = por %p65, %p66
      %p68 = scmp.ne.s32.totalorder %s56, %s57
      %p69 = scmp.eq.s32.totalorder %s26, 1
      %p70 = por %p68, %p69
      %p72 = scmp.ne.s32.totalorder %s57, %s71
      %p73 = scmp.eq.s32.totalorder %s26, 0
      %p74 = por %p72, %p73
      %s76 = sadd.s32 %s75, 1
      %p79 = scmp.eq.s32.totalorder %s20, 1
      %p80 = scmp.ne.s32.totalorder %s75, %s77
      %p81 = scmp.eq.s32.totalorder %s20, 0
      %p82 = por %p80, %p81
      %p83 = scmp.ne.s32.totalorder %s75, %s77
      %p84 = scmp.eq.s32.totalorder %s25, 1
      %p85 = por %p83, %p84
      %p86 = scmp.ne.s32.totalorder %s77, %s78
      %p87 = scmp.eq.s32.totalorder %s25, 0
      %p88 = por %p86, %p87
      %p89 = scmp.ne.s32.totalorder %s77, %s78
      %p90 = scmp.eq.s32.totalorder %s26, 1
      %p91 = por %p89, %p90
      %p93 = scmp.ne.s32.totalorder %s78, %s92
      %p94 = scmp.eq.s32.totalorder %s26, 0
      %p95 = por %p93, %p94
      %s97 = sadd.s32 %s96, 1
      %p100 = scmp.eq.s32.totalorder %s20, 1
      %p101 = scmp.ne.s32.totalorder %s96, %s98
      %p102 = scmp.eq.s32.totalorder %s20, 0
      %p103 = por %p101, %p102
      %p104 = scmp.ne.s32.totalorder %s96, %s98
      %p105 = scmp.eq.s32.totalorder %s25, 1
      %p106 = por %p104, %p105
      %p107 = scmp.ne.s32.totalorder %s98, %s99
      %p108 = scmp.eq.s32.totalorder %s25, 0
      %p109 = por %p107, %p108
      %p110 = scmp.ne.s32.totalorder %s98, %s99
      %p111 = scmp.eq.s32.totalorder %s26, 1
      %p112 = por %p110, %p111
      %p114 = scmp.ne.s32.totalorder %s99, %s113
      %p115 = scmp.eq.s32.totalorder %s26, 0
      %p116 = por %p114, %p115
      %s118 = sadd.s32 %s117, 1
      %p121 = scmp.eq.s32.totalorder %s20, 1
      %p122 = scmp.ne.s32.totalorder %s117, %s119
      %p123 = scmp.eq.s32.totalorder %s20, 0
      %p124 = por %p122, %p123
      %p125 = scmp.ne.s32.totalorder %s117, %s119
      %p126 = scmp.eq.s32.totalorder %s25, 1
      %p127 = por %p125, %p126
      %p128 = scmp.ne.s32.totalorder %s119, %s120
      %p129 = scmp.eq.s32.totalorder %s25, 0
      %p130 = por %p128, %p129
      %p131 = scmp.ne.s32.totalorder %s119, %s120
      %p132 = scmp.eq.s32.totalorder %s26, 1
      %p133 = por %p131, %p132
      %p135 = scmp.ne.s32.totalorder %s120, %s134
      %p136 = scmp.eq.s32.totalorder %s26, 0
      %p137 = por %p135, %p136
      %s138 = ssub.s32 %s20, %s27
      %p139 = scmp.eq.s32.totalorder %s138, 0
      %s141 = sadd.s32 %s140, 1
      %s142 = scalar_select %p139, %s140, %s141
      %p145 = pneg %p139
      %p146 = scmp.eq.s32.totalorder %s20, 1
      %p147 = por %p145, %p146
      %p148 = scmp.ne.s32.totalorder %s140, %s143
      %p149 = scmp.eq.s32.totalorder %s20, 0
      %p150 = por %p148, %p149
      %p151 = scmp.ne.s32.totalorder %s140, %s143
      %p152 = scmp.eq.s32.totalorder %s25, 1
      %p153 = por %p151, %p152
      %p154 = scmp.ne.s32.totalorder %s143, %s144
      %p155 = scmp.eq.s32.totalorder %s25, 0
      %p156 = por %p154, %p155
      %p157 = scmp.ne.s32.totalorder %s143, %s144
      %p158 = scmp.eq.s32.totalorder %s26, 1
      %p159 = por %p157, %p158
      %p161 = scmp.ne.s32.totalorder %s144, %s160
      %p162 = scmp.eq.s32.totalorder %s26, 0
      %p163 = por %p161, %p162
      %s164 = ssub.s32 %s20, %s27
      %p165 = scmp.eq.s32.totalorder %s164, 0
      %s167 = sadd.s32 %s166, 1
      %s168 = scalar_select %p165, %s166, %s167
      %p171 = pneg %p165
      %p172 = scmp.eq.s32.totalorder %s20, 1
      %p173 = por %p171, %p172
      %p174 = scmp.ne.s32.totalorder %s166, %s169
      %p175 = scmp.eq.s32.totalorder %s20, 0
      %p176 = por %p174, %p175
      %p177 = scmp.ne.s32.totalorder %s166, %s169
      %p178 = scmp.eq.s32.totalorder %s25, 1
      %p179 = por %p177, %p178
      %p180 = scmp.ne.s32.totalorder %s169, %s170
      %p181 = scmp.eq.s32.totalorder %s25, 0
      %p182 = por %p180, %p181
      %p183 = scmp.ne.s32.totalorder %s169, %s170
      %p184 = scmp.eq.s32.totalorder %s26, 1
      %p185 = por %p183, %p184
      %p187 = scmp.ne.s32.totalorder %s170, %s186
      %p188 = scmp.eq.s32.totalorder %s26, 0
      %p189 = por %p187, %p188
      %s190 = ssub.s32 %s20, %s27
      %p191 = scmp.eq.s32.totalorder %s190, 0
      %s193 = sadd.s32 %s192, 1
      %s194 = scalar_select %p191, %s192, %s193
      %p197 = pneg %p191
      %p198 = scmp.eq.s32.totalorder %s20, 1
      %p199 = por %p197, %p198
      %p200 = scmp.ne.s32.totalorder %s192, %s195
      %p201 = scmp.eq.s32.totalorder %s20, 0
      %p202 = por %p200, %p201
      %p203 = scmp.ne.s32.totalorder %s192, %s195
      %p204 = scmp.eq.s32.totalorder %s25, 1
      %p205 = por %p203, %p204
      %p206 = scmp.ne.s32.totalorder %s195, %s196
      %p207 = scmp.eq.s32.totalorder %s25, 0
      %p208 = por %p206, %p207
      %p209 = scmp.ne.s32.totalorder %s195, %s196
      %p210 = scmp.eq.s32.totalorder %s26, 1
      %p211 = por %p209, %p210
      %p213 = scmp.ne.s32.totalorder %s196, %s212
      %p214 = scmp.eq.s32.totalorder %s26, 0
      %p215 = por %p213, %p214
      %s216 = ssub.s32 %s20, %s27
      %p217 = scmp.eq.s32.totalorder %s216, 0
      %s219 = sadd.s32 %s218, 1
      %s220 = scalar_select %p217, %s218, %s219
      %p223 = pneg %p217
      %p224 = scmp.eq.s32.totalorder %s20, 1
      %p225 = por %p223, %p224
      %p226 = scmp.ne.s32.totalorder %s218, %s221
      %p227 = scmp.eq.s32.totalorder %s20, 0
      %p228 = por %p226, %p227
      %p229 = scmp.ne.s32.totalorder %s218, %s221
      %p230 = scmp.eq.s32.totalorder %s25, 1
      %p231 = por %p229, %p230
      %p232 = scmp.ne.s32.totalorder %s221, %s222
      %p233 = scmp.eq.s32.totalorder %s25, 0
      %p234 = por %p232, %p233
      %p235 = scmp.ne.s32.totalorder %s221, %s222
      %p236 = scmp.eq.s32.totalorder %s26, 1
      %p237 = por %p235, %p236
      %p239 = scmp.ne.s32.totalorder %s222, %s238
      %p240 = scmp.eq.s32.totalorder %s26, 0
      %p241 = por %p239, %p240
      %p242 = scmp.le.s32.totalorder 1, %s20
      %p243 = scmp.lt.s32.totalorder %s20, 3
      %p244 = pnand %p242, %p243
      %p245 = pneg %p244
      // Predicated region
      $region9: #{tpu_custom_call.1} parent=5 // pred_check
        _
      $region10: #{tpu_custom_call.1} parent=5 // pred_check_branch
        %247 = sbr.rel (%p244) target = $region12
      $region11: #{tpu_custom_call.1} parent=5 // pred_region
        %s248 = ssub.s32 %s20, 1
        // Predicated region
        $region13: #{tpu_custom_call.1} parent=11 // pred_check
          %p249 = pneg %p67
        $region14: #{tpu_custom_call.1} parent=11 // pred_check_branch
          %251 = sbr.rel (%p249) target = $region16
        $region15: #{tpu_custom_call.1} parent=11 // pred_region
          _
        $region16: #{tpu_custom_call.1} parent=11 // pred_fallthru
          _
        // Predicated region
        $region17: #{tpu_custom_call.1} parent=11 // pred_check
          %p252 = pneg %p88
        $region18: #{tpu_custom_call.1} parent=11 // pred_check_branch
          %254 = sbr.rel (%p252) target = $region20
        $region19: #{tpu_custom_call.1} parent=11 // pred_region
          _
        $region20: #{tpu_custom_call.1} parent=11 // pred_fallthru
          _
        // Predicated region
        $region21: #{tpu_custom_call.1} parent=11 // pred_check
          %p255 = pneg %p109
        $region22: #{tpu_custom_call.1} parent=11 // pred_check_branch
          %257 = sbr.rel (%p255) target = $region24
        $region23: #{tpu_custom_call.1} parent=11 // pred_region
          %s259 = ssub.s32 1024, 1024
          %260 = vsyncadd [#allocation3], %s259
          %s261 = sshll.u32 [#allocation2], 4
          %s262 = int_to_ptr.vmem [resolvable:$true] %s261
          %267 = dma.hbm_to_vmem [thread:$0]  %s3, 1024, %s262, [#allocation3], 64, 64, 4
        $region24: #{tpu_custom_call.1} parent=11 // pred_fallthru
          _
        // Predicated region
        $region25: #{tpu_custom_call.1} parent=11 // pred_check
          %p268 = pneg %p130
        $region26: #{tpu_custom_call.1} parent=11 // pred_check_branch
          %270 = sbr.rel (%p268) target = $region28
        $region27: #{tpu_custom_call.1} parent=11 // pred_region
          %s272 = ssub.s32 1024, 1024
          %273 = vsyncadd [#allocation6], %s272
          %s274 = sshll.u32 [#allocation5], 4
          %s275 = int_to_ptr.vmem [resolvable:$true] %s274
          %280 = dma.hbm_to_vmem [thread:$0]  %s4, 1024, %s275, [#allocation6], 64, 64, 4
        $region28: #{tpu_custom_call.1} parent=11 // pred_fallthru
          _
      $region12: #{tpu_custom_call.1} parent=5 // pred_fallthru
        _
      %p281 = scmp.lt.s32.totalorder %s20, 2
      // Predicated region
      $region29: #{tpu_custom_call.1} parent=5 // pred_check
        %p282 = pneg %p281
      $region30: #{tpu_custom_call.1} parent=5 // pred_check_branch
        %284 = sbr.rel (%p282) target = $region32
      $region31: #{tpu_custom_call.1} parent=5 // pred_region
        // Predicated region
        $region33: #{tpu_custom_call.1} parent=31 // pred_check
          %p285 = pneg %p40
        $region34: #{tpu_custom_call.1} parent=31 // pred_check_branch
          %287 = sbr.rel (%p285) target = $region36
        $region35: #{tpu_custom_call.1} parent=31 // pred_region
          %p288 = scmp.lt.s32.totalorder %s20, 1
          %s289 = scalar_select %p288, %s20, 1
          %s290 = smul.addr %s289, 16
          %s291 = smul.addr %s290, 4
          %s292 = scalar_lea.vmem %s0, %s291
        $region36: #{tpu_custom_call.1} parent=31 // pred_fallthru
          _
        // Predicated region
        $region37: #{tpu_custom_call.1} parent=31 // pred_check
          %p293 = pneg %p150
        $region38: #{tpu_custom_call.1} parent=31 // pred_check_branch
          %295 = sbr.rel (%p293) target = $region40
        $region39: #{tpu_custom_call.1} parent=31 // pred_region
          %p296 = scmp.lt.s32.totalorder %s20, 1
          %s297 = scalar_select %p296, %s20, 1
          %s298 = smul.addr %s297, 16
          %s299 = smul.addr %s298, 8
          %s300 = scalar_lea.vmem %s5, %s299
        $region40: #{tpu_custom_call.1} parent=31 // pred_fallthru
          _
        // Predicated region
        $region41: #{tpu_custom_call.1} parent=31 // pred_check
          %p301 = pneg %p176
        $region42: #{tpu_custom_call.1} parent=31 // pred_check_branch
          %303 = sbr.rel (%p301) target = $region44
        $region43: #{tpu_custom_call.1} parent=31 // pred_region
          %p304 = scmp.lt.s32.totalorder %s20, 1
          %s305 = scalar_select %p304, %s20, 1
          %s306 = scalar_lea.vmem %s6, %s305
        $region44: #{tpu_custom_call.1} parent=31 // pred_fallthru
          _
      $region32: #{tpu_custom_call.1} parent=5 // pred_fallthru
        _
      %p307 = scmp.le.s32.totalorder 1, %s20
      %p308 = scmp.lt.s32.totalorder %s20, 3
      %p309 = pnand %p307, %p308
      %p310 = pneg %p309
      // Predicated region
      $region45: #{tpu_custom_call.1} parent=5 // pred_check
        _
      $region46: #{tpu_custom_call.1} parent=5 // pred_check_branch
        %312 = sbr.rel (%p309) target = $region48
      $region47: #{tpu_custom_call.1} parent=5 // pred_region
        %s313 = ssub.s32 %s20, 1
        // Predicated region
        $region49: #{tpu_custom_call.1} parent=47 // pred_check
          %p314 = pneg %p109
        $region50: #{tpu_custom_call.1} parent=47 // pred_check_branch
          %316 = sbr.rel (%p314) target = $region52
        $region51: #{tpu_custom_call.1} parent=47 // pred_region
          %317 = dma.done [#allocation3], 1024
        $region52: #{tpu_custom_call.1} parent=47 // pred_fallthru
          _
        // Predicated region
        $region53: #{tpu_custom_call.1} parent=47 // pred_check
          %p318 = pneg %p130
        $region54: #{tpu_custom_call.1} parent=47 // pred_check_branch
          %320 = sbr.rel (%p318) target = $region56
        $region55: #{tpu_custom_call.1} parent=47 // pred_region
          %321 = dma.done [#allocation6], 1024
        $region56: #{tpu_custom_call.1} parent=47 // pred_fallthru
          _
        %p322 = scmp.lt.s32.totalorder %s25, 1
        %s323 = scalar_select %p322, %s25, 1
        %s324 = smul.addr %s323, 16
        %s325 = smul.addr %s324, 4
        %s326 = scalar_lea.vmem %s0, %s325
        %p327 = pneg %p46
        %p328 = pneg %p43
        %p329 = pneg %p67
        %p330 = pneg %p64
        %p331 = pneg %p88
        %p332 = pneg %p85
        %p333 = pneg %p109
        %p334 = pneg %p106
        %p335 = pneg %p130
        %p336 = pneg %p127
        %p337 = scmp.lt.s32.totalorder %s25, 1
        %s338 = scalar_select %p337, %s25, 1
        %s339 = smul.addr %s338, 16
        %s340 = smul.addr %s339, 8
        %s341 = scalar_lea.vmem %s5, %s340
        %p342 = pneg %p156
        %p343 = pneg %p153
        %p344 = scmp.lt.s32.totalorder %s25, 1
        %s345 = scalar_select %p344, %s25, 1
        %s346 = scalar_lea.vmem %s6, %s345
        %p347 = pneg %p182
        %p348 = pneg %p179
        %p349 = pneg %p208
        %p350 = pneg %p205
        %s351 = sand.u32 %s195, 1
        %s352 = scalar_lea.sflag [#allocation4], %s351
        %s353 = sand.u32 %s195, 1
        %s354 = smul.addr %s353, 128
        %s355 = scalar_lea.vmem [#allocation7], %s354
        %p356 = pneg %p234
        %p357 = pneg %p231
        %p358 = scmp.lt.s32.totalorder %s25, 1
        %s359 = scalar_select %p358, %s25, 1
        %s360 = scalar_lea.vmem %s8, %s359
        %p361 = scmp.lt.s32.totalorder %s25, 1
        %s362 = scalar_select %p361, %s25, 1
        %s363 = smul.addr %s362, 16
        %s364 = smul.addr %s363, 4
        %s365 = scalar_lea.vmem %s0, %s364
        %p366 = scmp.lt.s32.totalorder %s25, 1
        %s367 = scalar_select %p366, %s25, 1
        %s368 = smul.addr %s367, 16
        %s369 = smul.addr %s368, 8
        %s370 = scalar_lea.vmem %s5, %s369
        %p371 = scmp.lt.s32.totalorder %s25, 1
        %s372 = scalar_select %p371, %s25, 1
        %s373 = scalar_lea.vmem %s6, %s372
        %p374 = scmp.lt.s32.totalorder %s25, 1
        %s375 = scalar_select %p374, %s25, 1
        %s376 = scalar_lea.vmem %s8, %s375
        %v378 = vld [vmem:[%s365] sm:$0xf]
        %v379 = vld [vmem:[%s365 + $0x4] sm:$0xf]
        %v380 = vld [vmem:[%s365 + $0x8] sm:$0xf]
        %v381 = vld [vmem:[%s365 + $0xc] sm:$0xf]
        %v382 = vld [vmem:[%s365 + $0x10] sm:$0xf]
        %v383 = vld [vmem:[%s365 + $0x14] sm:$0xf]
        %v384 = vld [vmem:[%s365 + $0x18] sm:$0xf]
        %v385 = vld [vmem:[%s365 + $0x1c] sm:$0xf]
        %v386 = vld [vmem:[%s365 + $0x20] sm:$0xf]
        %v387 = vld [vmem:[%s365 + $0x24] sm:$0xf]
        %v388 = vld [vmem:[%s365 + $0x28] sm:$0xf]
        %v389 = vld [vmem:[%s365 + $0x2c] sm:$0xf]
        %v390 = vld [vmem:[%s365 + $0x30] sm:$0xf]
        %v391 = vld [vmem:[%s365 + $0x34] sm:$0xf]
        %v392 = vld [vmem:[%s365 + $0x38] sm:$0xf]
        %v393 = vld [vmem:[%s365 + $0x3c] sm:$0xf]
        %v394 = vunpack.c.l.bf16 %v378
        %v395 = vunpack.c.l.bf16 %v379
        %v396 = vunpack.c.l.bf16 %v380
        %v397 = vunpack.c.l.bf16 %v381
        %v398 = vunpack.c.l.bf16 %v382
        %v399 = vunpack.c.l.bf16 %v383
        %v400 = vunpack.c.l.bf16 %v384
        %v401 = vunpack.c.l.bf16 %v385
        %v402 = vunpack.c.l.bf16 %v386
        %v403 = vunpack.c.l.bf16 %v387
        %v404 = vunpack.c.l.bf16 %v388
        %v405 = vunpack.c.l.bf16 %v389
        %v406 = vunpack.c.l.bf16 %v390
        %v407 = vunpack.c.l.bf16 %v391
        %v408 = vunpack.c.l.bf16 %v392
        %v409 = vunpack.c.l.bf16 %v393
        %v410 = vmax.f32 %v394, %v398
        %v411 = vmax.f32 %v395, %v399
        %v412 = vmax.f32 %v396, %v400
        %v413 = vmax.f32 %v397, %v401
        %v414 = vmax.f32 %v410, %v402
        %v415 = vmax.f32 %v411, %v403
        %v416 = vmax.f32 %v412, %v404
        %v417 = vmax.f32 %v413, %v405
        %v418 = vmax.f32 %v414, %v406
        %v419 = vmax.f32 %v415, %v407
        %v420 = vmax.f32 %v416, %v408
        %v421 = vmax.f32 %v417, %v409
        %v422 = vmax.f32 %v418, %v419
        %v423 = vmax.f32 %v420, %v421
        %v424 = vmax.f32 %v422, %v423
        %v425 = vrot.slane %v424, 4
        %v426 = vmax.f32 %v424, %v425
        %v427 = vrot.slane %v426, 2
        %v428 = vmax.f32 %v426, %v427
        %v429 = vrot.slane %v428, 1
        %v430 = vmax.f32 %v428, %v429
        %v431 = vpack.c.bf16 %v430, %v430
        %v432 = vld [vmem:[%s1] sm:$0xf]
        %v433 = vld [vmem:[%s1 + $0x4] sm:$0xf]
        %v434 = vld [vmem:[%s1 + $0x8] sm:$0xf]
        %v435 = vld [vmem:[%s1 + $0xc] sm:$0xf]
        %v436 = vld [vmem:[%s1 + $0x10] sm:$0xf]
        %v437 = vld [vmem:[%s1 + $0x14] sm:$0xf]
        %v438 = vld [vmem:[%s1 + $0x18] sm:$0xf]
        %v439 = vld [vmem:[%s1 + $0x1c] sm:$0xf]
        %v440 = vld [vmem:[%s1 + $0x20] sm:$0xf]
        %v441 = vld [vmem:[%s1 + $0x24] sm:$0xf]
        %v442 = vld [vmem:[%s1 + $0x28] sm:$0xf]
        %v443 = vld [vmem:[%s1 + $0x2c] sm:$0xf]
        %v444 = vld [vmem:[%s1 + $0x30] sm:$0xf]
        %v445 = vld [vmem:[%s1 + $0x34] sm:$0xf]
        %v446 = vld [vmem:[%s1 + $0x38] sm:$0xf]
        %v447 = vld [vmem:[%s1 + $0x3c] sm:$0xf]
        %v464 = vunpack.c.l.b16 %v378
        %v465 = vunpack.c.l.b16 %v379
        %v466 = vunpack.c.l.b16 %v380
        %v467 = vunpack.c.l.b16 %v381
        %v468 = vunpack.c.l.b16 %v382
        %v469 = vunpack.c.l.b16 %v383
        %v470 = vunpack.c.l.b16 %v384
        %v471 = vunpack.c.l.b16 %v385
        %v472 = vunpack.c.l.b16 %v386
        %v473 = vunpack.c.l.b16 %v387
        %v474 = vunpack.c.l.b16 %v388
        %v475 = vunpack.c.l.b16 %v389
        %v476 = vunpack.c.l.b16 %v390
        %v477 = vunpack.c.l.b16 %v391
        %v478 = vunpack.c.l.b16 %v392
        %v479 = vunpack.c.l.b16 %v393
        %v480 = vpack.c.b16 %v465, %v464
        %v481 = vpack.c.b16 %v467, %v466
        %v482 = vpack.c.b16 %v469, %v468
        %v483 = vpack.c.b16 %v471, %v470
        %v484 = vpack.c.b16 %v473, %v472
        %v485 = vpack.c.b16 %v475, %v474
        %v486 = vpack.c.b16 %v477, %v476
        %v487 = vpack.c.b16 %v479, %v478
        %v512 = vunpack.c.l.b16 %v432
        %v513 = vunpack.c.l.b16 %v433
        %v514 = vunpack.c.l.b16 %v434
        %v515 = vunpack.c.l.b16 %v435
        %v516 = vunpack.c.l.b16 %v436
        %v517 = vunpack.c.l.b16 %v437
        %v518 = vunpack.c.l.b16 %v438
        %v519 = vunpack.c.l.b16 %v439
        %v520 = vunpack.c.l.b16 %v440
        %v521 = vunpack.c.l.b16 %v441
        %v522 = vunpack.c.l.b16 %v442
        %v523 = vunpack.c.l.b16 %v443
        %v524 = vunpack.c.l.b16 %v444
        %v525 = vunpack.c.l.b16 %v445
        %v526 = vunpack.c.l.b16 %v446
        %v527 = vunpack.c.l.b16 %v447
        %v528 = vpack.c.b16 %v513, %v512
        %v529 = vpack.c.b16 %v515, %v514
        %v530 = vpack.c.b16 %v517, %v516
        %v531 = vpack.c.b16 %v519, %v518
        %v532 = vpack.c.b16 %v521, %v520
        %v533 = vpack.c.b16 %v523, %v522
        %v534 = vpack.c.b16 %v525, %v524
        %v535 = vpack.c.b16 %v527, %v526
        %544 = vmatprep.subr.bf16.mxu0 0
        %545 = vmatpush1.bf16.msra.mxu0 %v528
        %546 = vmatprep.subr.bf16.mxu0 0
        %547 = vmatpush1.bf16.msra.mxu0 %v529
        %548 = vmatprep.subr.bf16.mxu0 0
        %549 = vmatpush1.bf16.msra.mxu0 %v530
        %550 = vmatprep.subr.bf16.mxu0 0
        %551 = vmatpush1.bf16.msra.mxu0 %v531
        %552 = vmatprep.subr.bf16.mxu0 0
        %553 = vmatpush1.bf16.msra.mxu0 %v532
        %554 = vmatprep.subr.bf16.mxu0 0
        %555 = vmatpush1.bf16.msra.mxu0 %v533
        %556 = vmatprep.subr.bf16.mxu0 0
        %557 = vmatpush1.bf16.msra.mxu0 %v534
        %558 = vmatprep.subr.bf16.mxu0 0
        %559 = vmatpush1.bf16.msra.mxu0 %v535
        %560 = vmatprep.subr.bf16.mxu0 0
        %561 = vmatpush1.bf16.msra.mxu0 0
        %562 = vmatprep.subr.bf16.mxu0 0
        %563 = vmatpush1.bf16.msra.mxu0 0
        %564 = vmatprep.subr.bf16.mxu0 0
        %565 = vmatpush1.bf16.msra.mxu0 0
        %566 = vmatprep.subr.bf16.mxu0 0
        %567 = vmatpush1.bf16.msra.mxu0 0
        %568 = vmatprep.subr.bf16.mxu0 0
        %569 = vmatpush1.bf16.msra.mxu0 0
        %570 = vmatprep.subr.bf16.mxu0 0
        %571 = vmatpush1.bf16.msra.mxu0 0
        %572 = vmatprep.subr.bf16.mxu0 0
        %573 = vmatpush1.bf16.msra.mxu0 0
        %574 = vmatprep.subr.bf16.mxu0 0
        %575 = vmatpush1.bf16.msra.mxu0 0
        %576 = vmatprep.mubr.bf16.mxu0 0
        %577 = vmatmul.mubr.bf16.gmra.mrb[0].mxu0 %v480
        %v578 = vpop.f32.mrb[0].mxu0
        %v579 = vadd.f32 0.0, %v578
        %v580 = vpop.f32.mrb[0].mxu0
        %v581 = vpop.f32.mrb[0].mxu0
        %v582 = vadd.f32 0.0, %v581
        %v583 = vpop.f32.mrb[0].mxu0
        %584 = vmatprep.mubr.bf16.mxu0 0
        %585 = vmatmul.mubr.bf16.gmra.mrb[0].mxu0 %v481
        %v586 = vpop.f32.mrb[0].mxu0
        %v587 = vadd.f32 0.0, %v586
        %v588 = vpop.f32.mrb[0].mxu0
        %v589 = vpop.f32.mrb[0].mxu0
        %v590 = vadd.f32 0.0, %v589
        %v591 = vpop.f32.mrb[0].mxu0
        %592 = vmatprep.mubr.bf16.mxu0 0
        %593 = vmatmul.mubr.bf16.gmra.mrb[0].mxu0 %v482
        %v594 = vpop.f32.mrb[0].mxu0
        %v595 = vadd.f32 0.0, %v594
        %v596 = vpop.f32.mrb[0].mxu0
        %v597 = vpop.f32.mrb[0].mxu0
        %v598 = vadd.f32 0.0, %v597
        %v599 = vpop.f32.mrb[0].mxu0
        %600 = vmatprep.mubr.bf16.mxu0 0
        %601 = vmatmul.mubr.bf16.gmra.mrb[0].mxu0 %v483
        %v602 = vpop.f32.mrb[0].mxu0
        %v603 = vadd.f32 0.0, %v602
        %v604 = vpop.f32.mrb[0].mxu0
        %v605 = vpop.f32.mrb[0].mxu0
        %v606 = vadd.f32 0.0, %v605
        %v607 = vpop.f32.mrb[0].mxu0
        %608 = vmatprep.mubr.bf16.mxu0 0
        %609 = vmatmul.mubr.bf16.gmra.mrb[0].mxu0 %v484
        %v610 = vpop.f32.mrb[0].mxu0
        %v611 = vadd.f32 0.0, %v610
        %v612 = vpop.f32.mrb[0].mxu0
        %v613 = vpop.f32.mrb[0].mxu0
        %v614 = vadd.f32 0.0, %v613
        %v615 = vpop.f32.mrb[0].mxu0
        %616 = vmatprep.mubr.bf16.mxu0 0
        %617 = vmatmul.mubr.bf16.gmra.mrb[0].mxu0 %v485
        %v618 = vpop.f32.mrb[0].mxu0
        %v619 = vadd.f32 0.0, %v618
        %v620 = vpop.f32.mrb[0].mxu0
        %v621 = vpop.f32.mrb[0].mxu0
        %v622 = vadd.f32 0.0, %v621
        %v623 = vpop.f32.mrb[0].mxu0
        %624 = vmatprep.mubr.bf16.mxu0 0
        %625 = vmatmul.mubr.bf16.gmra.mrb[0].mxu0 %v486
        %v626 = vpop.f32.mrb[0].mxu0
        %v627 = vadd.f32 0.0, %v626
        %v628 = vpop.f32.mrb[0].mxu0
        %v629 = vpop.f32.mrb[0].mxu0
        %v630 = vadd.f32 0.0, %v629
        %v631 = vpop.f32.mrb[0].mxu0
        %632 = vmatprep.mubr.bf16.mxu0 0
        %633 = vmatmul.mubr.bf16.gmra.mrb[0].mxu0 %v487
        %v634 = vpop.f32.mrb[0].mxu0
        %v635 = vadd.f32 0.0, %v634
        %v636 = vpop.f32.mrb[0].mxu0
        %v637 = vpop.f32.mrb[0].mxu0
        %v638 = vadd.f32 0.0, %v637
        %v639 = vpop.f32.mrb[0].mxu0
        %640 = vdwg.mxu0
        %v641 = vld [vmem:[%s2] sm:$0xf]
        %v642 = vld [vmem:[%s2 + $0x4] sm:$0xf]
        %v643 = vld [vmem:[%s2 + $0x8] sm:$0xf]
        %v644 = vld [vmem:[%s2 + $0xc] sm:$0xf]
        %v645 = vld [vmem:[%s2 + $0x10] sm:$0xf]
        %v646 = vld [vmem:[%s2 + $0x14] sm:$0xf]
        %v647 = vld [vmem:[%s2 + $0x18] sm:$0xf]
        %v648 = vld [vmem:[%s2 + $0x1c] sm:$0xf]
        %v649 = vld [vmem:[%s2 + $0x20] sm:$0xf]
        %v650 = vld [vmem:[%s2 + $0x24] sm:$0xf]
        %v651 = vld [vmem:[%s2 + $0x28] sm:$0xf]
        %v652 = vld [vmem:[%s2 + $0x2c] sm:$0xf]
        %v653 = vld [vmem:[%s2 + $0x30] sm:$0xf]
        %v654 = vld [vmem:[%s2 + $0x34] sm:$0xf]
        %v655 = vld [vmem:[%s2 + $0x38] sm:$0xf]
        %v656 = vld [vmem:[%s2 + $0x3c] sm:$0xf]
        %v673 = vunpack.c.l.b16 %v641
        %v674 = vunpack.c.l.b16 %v642
        %v675 = vunpack.c.l.b16 %v643
        %v676 = vunpack.c.l.b16 %v644
        %v677 = vunpack.c.l.b16 %v645
        %v678 = vunpack.c.l.b16 %v646
        %v679 = vunpack.c.l.b16 %v647
        %v680 = vunpack.c.l.b16 %v648
        %v681 = vunpack.c.l.b16 %v649
        %v682 = vunpack.c.l.b16 %v650
        %v683 = vunpack.c.l.b16 %v651
        %v684 = vunpack.c.l.b16 %v652
        %v685 = vunpack.c.l.b16 %v653
        %v686 = vunpack.c.l.b16 %v654
        %v687 = vunpack.c.l.b16 %v655
        %v688 = vunpack.c.l.b16 %v656
        %v689 = vpack.c.b16 %v674, %v673
        %v690 = vpack.c.b16 %v676, %v675
        %v691 = vpack.c.b16 %v678, %v677
        %v692 = vpack.c.b16 %v680, %v679
        %v693 = vpack.c.b16 %v682, %v681
        %v694 = vpack.c.b16 %v684, %v683
        %v695 = vpack.c.b16 %v686, %v685
        %v696 = vpack.c.b16 %v688, %v687
        %705 = vmatprep.subr.bf16.mxu0 0
        %706 = vmatpush1.bf16.msra.mxu0 %v689
        %707 = vmatprep.subr.bf16.mxu0 0
        %708 = vmatpush1.bf16.msra.mxu0 %v690
        %709 = vmatprep.subr.bf16.mxu0 0
        %710 = vmatpush1.bf16.msra.mxu0 %v691
        %711 = vmatprep.subr.bf16.mxu0 0
        %712 = vmatpush1.bf16.msra.mxu0 %v692
        %713 = vmatprep.subr.bf16.mxu0 0
        %714 = vmatpush1.bf16.msra.mxu0 %v693
        %715 = vmatprep.subr.bf16.mxu0 0
        %716 = vmatpush1.bf16.msra.mxu0 %v694
        %717 = vmatprep.subr.bf16.mxu0 0
        %718 = vmatpush1.bf16.msra.mxu0 %v695
        %719 = vmatprep.subr.bf16.mxu0 0
        %720 = vmatpush1.bf16.msra.mxu0 %v696
        %721 = vmatprep.subr.bf16.mxu0 0
        %722 = vmatpush1.bf16.msra.mxu0 0
        %723 = vmatprep.subr.bf16.mxu0 0
        %724 = vmatpush1.bf16.msra.mxu0 0
        %725 = vmatprep.subr.bf16.mxu0 0
        %726 = vmatpush1.bf16.msra.mxu0 0
        %727 = vmatprep.subr.bf16.mxu0 0
        %728 = vmatpush1.bf16.msra.mxu0 0
        %729 = vmatprep.subr.bf16.mxu0 0
        %730 = vmatpush1.bf16.msra.mxu0 0
        %731 = vmatprep.subr.bf16.mxu0 0
        %732 = vmatpush1.bf16.msra.mxu0 0
        %733 = vmatprep.subr.bf16.mxu0 0
        %734 = vmatpush1.bf16.msra.mxu0 0
        %735 = vmatprep.subr.bf16.mxu0 0
        %736 = vmatpush1.bf16.msra.mxu0 0
        %737 = vmatprep.mubr.bf16.mxu0 0
        %738 = vmatmul.mubr.bf16.gmra.mrb[0].mxu0 %v431
        %v739 = vpop.f32.mrb[0].mxu0
        %v740 = vadd.f32 0.0, %v739
        %v741 = vpop.f32.mrb[0].mxu0
        %v742 = vpop.f32.mrb[0].mxu0
        %v743 = vpop.f32.mrb[0].mxu0
        %744 = vdwg.mxu0
        %v745 = vlaneseq
        %v746 = vshrl.u32 %v745, 7
        %v747 = vsub.s32 0, %v746
        %v748 = vrot.slane %v740, %v747
        %v749 = vadd.f32 %v579, %v748
        %v750 = vadd.f32 %v582, %v748
        %v751 = vadd.f32 %v587, %v748
        %v752 = vadd.f32 %v590, %v748
        %v753 = vadd.f32 %v595, %v748
        %v754 = vadd.f32 %v598, %v748
        %v755 = vadd.f32 %v603, %v748
        %v756 = vadd.f32 %v606, %v748
        %v757 = vadd.f32 %v611, %v748
        %v758 = vadd.f32 %v614, %v748
        %v759 = vadd.f32 %v619, %v748
        %v760 = vadd.f32 %v622, %v748
        %v761 = vadd.f32 %v627, %v748
        %v762 = vadd.f32 %v630, %v748
        %v763 = vadd.f32 %v635, %v748
        %v764 = vadd.f32 %v638, %v748
        %v765 = vld [vmem:[#allocation2] sm:$0xf]
        %v766 = vld [vmem:[#allocation2 + $0x4] sm:$0xf]
        %v767 = vld [vmem:[#allocation2 + $0x8] sm:$0xf]
        %v768 = vld [vmem:[#allocation2 + $0xc] sm:$0xf]
        %v769 = vld [vmem:[#allocation2 + $0x10] sm:$0xf]
        %v770 = vld [vmem:[#allocation2 + $0x14] sm:$0xf]
        %v771 = vld [vmem:[#allocation2 + $0x18] sm:$0xf]
        %v772 = vld [vmem:[#allocation2 + $0x1c] sm:$0xf]
        %v773 = vld [vmem:[#allocation2 + $0x20] sm:$0xf]
        %v774 = vld [vmem:[#allocation2 + $0x24] sm:$0xf]
        %v775 = vld [vmem:[#allocation2 + $0x28] sm:$0xf]
        %v776 = vld [vmem:[#allocation2 + $0x2c] sm:$0xf]
        %v777 = vld [vmem:[#allocation2 + $0x30] sm:$0xf]
        %v778 = vld [vmem:[#allocation2 + $0x34] sm:$0xf]
        %v779 = vld [vmem:[#allocation2 + $0x38] sm:$0xf]
        %v780 = vld [vmem:[#allocation2 + $0x3c] sm:$0xf]
        %v797 = vunpack.c.l.b16 %v765
        %v798 = vunpack.c.l.b16 %v766
        %v799 = vunpack.c.l.b16 %v767
        %v800 = vunpack.c.l.b16 %v768
        %v801 = vunpack.c.l.b16 %v769
        %v802 = vunpack.c.l.b16 %v770
        %v803 = vunpack.c.l.b16 %v771
        %v804 = vunpack.c.l.b16 %v772
        %v805 = vunpack.c.l.b16 %v773
        %v806 = vunpack.c.l.b16 %v774
        %v807 = vunpack.c.l.b16 %v775
        %v808 = vunpack.c.l.b16 %v776
        %v809 = vunpack.c.l.b16 %v777
        %v810 = vunpack.c.l.b16 %v778
        %v811 = vunpack.c.l.b16 %v779
        %v812 = vunpack.c.l.b16 %v780
        %v813 = vpack.c.b16 %v798, %v797
        %v814 = vpack.c.b16 %v800, %v799
        %v815 = vpack.c.b16 %v802, %v801
        %v816 = vpack.c.b16 %v804, %v803
        %v817 = vpack.c.b16 %v806, %v805
        %v818 = vpack.c.b16 %v808, %v807
        %v819 = vpack.c.b16 %v810, %v809
        %v820 = vpack.c.b16 %v812, %v811
        %829 = vmatprep.subr.bf16.mxu0 0
        %830 = vmatpush1.bf16.msra.mxu0 %v813
        %831 = vmatprep.subr.bf16.mxu0 0
        %832 = vmatpush1.bf16.msra.mxu0 %v814
        %833 = vmatprep.subr.bf16.mxu0 0
        %834 = vmatpush1.bf16.msra.mxu0 %v815
        %835 = vmatprep.subr.bf16.mxu0 0
        %836 = vmatpush1.bf16.msra.mxu0 %v816
        %837 = vmatprep.subr.bf16.mxu0 0
        %838 = vmatpush1.bf16.msra.mxu0 %v817
        %839 = vmatprep.subr.bf16.mxu0 0
        %840 = vmatpush1.bf16.msra.mxu0 %v818
        %841 = vmatprep.subr.bf16.mxu0 0
        %842 = vmatpush1.bf16.msra.mxu0 %v819
        %843 = vmatprep.subr.bf16.mxu0 0
        %844 = vmatpush1.bf16.msra.mxu0 %v820
        %845 = vmatprep.subr.bf16.mxu0 0
        %846 = vmatpush1.bf16.msra.mxu0 0
        %847 = vmatprep.subr.bf16.mxu0 0
        %848 = vmatpush1.bf16.msra.mxu0 0
        %849 = vmatprep.subr.bf16.mxu0 0
        %850 = vmatpush1.bf16.msra.mxu0 0
        %851 = vmatprep.subr.bf16.mxu0 0
        %852 = vmatpush1.bf16.msra.mxu0 0
        %853 = vmatprep.subr.bf16.mxu0 0
        %854 = vmatpush1.bf16.msra.mxu0 0
        %855 = vmatprep.subr.bf16.mxu0 0
        %856 = vmatpush1.bf16.msra.mxu0 0
        %857 = vmatprep.subr.bf16.mxu0 0
        %858 = vmatpush1.bf16.msra.mxu0 0
        %859 = vmatprep.subr.bf16.mxu0 0
        %860 = vmatpush1.bf16.msra.mxu0 0
        %861 = vmatprep.mubr.bf16.mxu0 0
        %862 = vmatmul.mubr.bf16.gmra.mrb[0].mxu0 %v480
        %v863 = vpop.f32.mrb[0].mxu0
        %v864 = vadd.f32 0.0, %v863
        %v865 = vpop.f32.mrb[0].mxu0
        %v866 = vpop.f32.mrb[0].mxu0
        %v867 = vadd.f32 0.0, %v866
        %v868 = vpop.f32.mrb[0].mxu0
        %869 = vmatprep.mubr.bf16.mxu0 0
        %870 = vmatmul.mubr.bf16.gmra.mrb[0].mxu0 %v481
        %v871 = vpop.f32.mrb[0].mxu0
        %v872 = vadd.f32 0.0, %v871
        %v873 = vpop.f32.mrb[0].mxu0
        %v874 = vpop.f32.mrb[0].mxu0
        %v875 = vadd.f32 0.0, %v874
        %v876 = vpop.f32.mrb[0].mxu0
        %877 = vmatprep.mubr.bf16.mxu0 0
        %878 = vmatmul.mubr.bf16.gmra.mrb[0].mxu0 %v482
        %v879 = vpop.f32.mrb[0].mxu0
        %v880 = vadd.f32 0.0, %v879
        %v881 = vpop.f32.mrb[0].mxu0
        %v882 = vpop.f32.mrb[0].mxu0
        %v883 = vadd.f32 0.0, %v882
        %v884 = vpop.f32.mrb[0].mxu0
        %885 = vmatprep.mubr.bf16.mxu0 0
        %886 = vmatmul.mubr.bf16.gmra.mrb[0].mxu0 %v483
        %v887 = vpop.f32.mrb[0].mxu0
        %v888 = vadd.f32 0.0, %v887
        %v889 = vpop.f32.mrb[0].mxu0
        %v890 = vpop.f32.mrb[0].mxu0
        %v891 = vadd.f32 0.0, %v890
        %v892 = vpop.f32.mrb[0].mxu0
        %893 = vmatprep.mubr.bf16.mxu0 0
        %894 = vmatmul.mubr.bf16.gmra.mrb[0].mxu0 %v484
        %v895 = vpop.f32.mrb[0].mxu0
        %v896 = vadd.f32 0.0, %v895
        %v897 = vpop.f32.mrb[0].mxu0
        %v898 = vpop.f32.mrb[0].mxu0
        %v899 = vadd.f32 0.0, %v898
        %v900 = vpop.f32.mrb[0].mxu0
        %901 = vmatprep.mubr.bf16.mxu0 0
        %902 = vmatmul.mubr.bf16.gmra.mrb[0].mxu0 %v485
        %v903 = vpop.f32.mrb[0].mxu0
        %v904 = vadd.f32 0.0, %v903
        %v905 = vpop.f32.mrb[0].mxu0
        %v906 = vpop.f32.mrb[0].mxu0
        %v907 = vadd.f32 0.0, %v906
        %v908 = vpop.f32.mrb[0].mxu0
        %909 = vmatprep.mubr.bf16.mxu0 0
        %910 = vmatmul.mubr.bf16.gmra.mrb[0].mxu0 %v486
        %v911 = vpop.f32.mrb[0].mxu0
        %v912 = vadd.f32 0.0, %v911
        %v913 = vpop.f32.mrb[0].mxu0
        %v914 = vpop.f32.mrb[0].mxu0
        %v915 = vadd.f32 0.0, %v914
        %v916 = vpop.f32.mrb[0].mxu0
        %917 = vmatprep.mubr.bf16.mxu0 0
        %918 = vmatmul.mubr.bf16.gmra.mrb[0].mxu0 %v487
        %v919 = vpop.f32.mrb[0].mxu0
        %v920 = vadd.f32 0.0, %v919
        %v921 = vpop.f32.mrb[0].mxu0
        %v922 = vpop.f32.mrb[0].mxu0
        %v923 = vadd.f32 0.0, %v922
        %v924 = vpop.f32.mrb[0].mxu0
        %925 = vdwg.mxu0
        %v926 = vld [vmem:[#allocation5] sm:$0xf]
        %v927 = vld [vmem:[#allocation5 + $0x4] sm:$0xf]
        %v928 = vld [vmem:[#allocation5 + $0x8] sm:$0xf]
        %v929 = vld [vmem:[#allocation5 + $0xc] sm:$0xf]
        %v930 = vld [vmem:[#allocation5 + $0x10] sm:$0xf]
        %v931 = vld [vmem:[#allocation5 + $0x14] sm:$0xf]
        %v932 = vld [vmem:[#allocation5 + $0x18] sm:$0xf]
        %v933 = vld [vmem:[#allocation5 + $0x1c] sm:$0xf]
        %v934 = vld [vmem:[#allocation5 + $0x20] sm:$0xf]
        %v935 = vld [vmem:[#allocation5 + $0x24] sm:$0xf]
        %v936 = vld [vmem:[#allocation5 + $0x28] sm:$0xf]
        %v937 = vld [vmem:[#allocation5 + $0x2c] sm:$0xf]
        %v938 = vld [vmem:[#allocation5 + $0x30] sm:$0xf]
        %v939 = vld [vmem:[#allocation5 + $0x34] sm:$0xf]
        %v940 = vld [vmem:[#allocation5 + $0x38] sm:$0xf]
        %v941 = vld [vmem:[#allocation5 + $0x3c] sm:$0xf]
        %v958 = vunpack.c.l.b16 %v926
        %v959 = vunpack.c.l.b16 %v927
        %v960 = vunpack.c.l.b16 %v928
        %v961 = vunpack.c.l.b16 %v929
        %v962 = vunpack.c.l.b16 %v930
        %v963 = vunpack.c.l.b16 %v931
        %v964 = vunpack.c.l.b16 %v932
        %v965 = vunpack.c.l.b16 %v933
        %v966 = vunpack.c.l.b16 %v934
        %v967 = vunpack.c.l.b16 %v935
        %v968 = vunpack.c.l.b16 %v936
        %v969 = vunpack.c.l.b16 %v937
        %v970 = vunpack.c.l.b16 %v938
        %v971 = vunpack.c.l.b16 %v939
        %v972 = vunpack.c.l.b16 %v940
        %v973 = vunpack.c.l.b16 %v941
        %v974 = vpack.c.b16 %v959, %v958
        %v975 = vpack.c.b16 %v961, %v960
        %v976 = vpack.c.b16 %v963, %v962
        %v977 = vpack.c.b16 %v965, %v964
        %v978 = vpack.c.b16 %v967, %v966
        %v979 = vpack.c.b16 %v969, %v968
        %v980 = vpack.c.b16 %v971, %v970
        %v981 = vpack.c.b16 %v973, %v972
        %990 = vmatprep.subr.bf16.mxu0 0
        %991 = vmatpush1.bf16.msra.mxu0 %v974
        %992 = vmatprep.subr.bf16.mxu0 0
        %993 = vmatpush1.bf16.msra.mxu0 %v975
        %994 = vmatprep.subr.bf16.mxu0 0
        %995 = vmatpush1.bf16.msra.mxu0 %v976
        %996 = vmatprep.subr.bf16.mxu0 0
        %997 = vmatpush1.bf16.msra.mxu0 %v977
        %998 = vmatprep.subr.bf16.mxu0 0
        %999 = vmatpush1.bf16.msra.mxu0 %v978
        %1000 = vmatprep.subr.bf16.mxu0 0
        %1001 = vmatpush1.bf16.msra.mxu0 %v979
        %1002 = vmatprep.subr.bf16.mxu0 0
        %1003 = vmatpush1.bf16.msra.mxu0 %v980
        %1004 = vmatprep.subr.bf16.mxu0 0
        %1005 = vmatpush1.bf16.msra.mxu0 %v981
        %1006 = vmatprep.subr.bf16.mxu0 0
        %1007 = vmatpush1.bf16.msra.mxu0 0
        %1008 = vmatprep.subr.bf16.mxu0 0
        %1009 = vmatpush1.bf16.msra.mxu0 0
        %1010 = vmatprep.subr.bf16.mxu0 0
        %1011 = vmatpush1.bf16.msra.mxu0 0
        %1012 = vmatprep.subr.bf16.mxu0 0
        %1013 = vmatpush1.bf16.msra.mxu0 0
        %1014 = vmatprep.subr.bf16.mxu0 0
        %1015 = vmatpush1.bf16.msra.mxu0 0
        %1016 = vmatprep.subr.bf16.mxu0 0
        %1017 = vmatpush1.bf16.msra.mxu0 0
        %1018 = vmatprep.subr.bf16.mxu0 0
        %1019 = vmatpush1.bf16.msra.mxu0 0
        %1020 = vmatprep.subr.bf16.mxu0 0
        %1021 = vmatpush1.bf16.msra.mxu0 0
        %1022 = vmatprep.mubr.bf16.mxu0 0
        %1023 = vmatmul.mubr.bf16.gmra.mrb[0].mxu0 %v431
        %v1024 = vpop.f32.mrb[0].mxu0
        %v1025 = vadd.f32 0.0, %v1024
        %v1026 = vpop.f32.mrb[0].mxu0
        %v1027 = vpop.f32.mrb[0].mxu0
        %v1028 = vpop.f32.mrb[0].mxu0
        %1029 = vdwg.mxu0
        %v1030 = vlaneseq
        %v1031 = vshrl.u32 %v1030, 7
        %v1032 = vsub.s32 0, %v1031
        %v1033 = vrot.slane %v1025, %v1032
        %v1034 = vadd.f32 %v864, %v1033
        %v1035 = vadd.f32 %v867, %v1033
        %v1036 = vadd.f32 %v872, %v1033
        %v1037 = vadd.f32 %v875, %v1033
        %v1038 = vadd.f32 %v880, %v1033
        %v1039 = vadd.f32 %v883, %v1033
        %v1040 = vadd.f32 %v888, %v1033
        %v1041 = vadd.f32 %v891, %v1033
        %v1042 = vadd.f32 %v896, %v1033
        %v1043 = vadd.f32 %v899, %v1033
        %v1044 = vadd.f32 %v904, %v1033
        %v1045 = vadd.f32 %v907, %v1033
        %v1046 = vadd.f32 %v912, %v1033
        %v1047 = vadd.f32 %v915, %v1033
        %v1048 = vadd.f32 %v920, %v1033
        %v1049 = vadd.f32 %v923, %v1033
        %v1050 = vpack.c.bf16 %v750, %v749
        %v1051 = vpack.c.bf16 %v752, %v751
        %v1052 = vpack.c.bf16 %v754, %v753
        %v1053 = vpack.c.bf16 %v756, %v755
        %v1054 = vpack.c.bf16 %v758, %v757
        %v1055 = vpack.c.bf16 %v760, %v759
        %v1056 = vpack.c.bf16 %v762, %v761
        %v1057 = vpack.c.bf16 %v764, %v763
        %v1058 = vpack.c.bf16 %v1035, %v1034
        %v1059 = vpack.c.bf16 %v1037, %v1036
        %v1060 = vpack.c.bf16 %v1039, %v1038
        %v1061 = vpack.c.bf16 %v1041, %v1040
        %v1062 = vpack.c.bf16 %v1043, %v1042
        %v1063 = vpack.c.bf16 %v1045, %v1044
        %v1064 = vpack.c.bf16 %v1047, %v1046
        %v1065 = vpack.c.bf16 %v1049, %v1048
        %1066 = vmatprep.subr.bf16.mxu0 0
        %1067 = vmatpush1.bf16.xpose.msra.mxu0 %v1058
        %1068 = vmatprep.subr.bf16.mxu0 0
        %1069 = vmatpush1.bf16.xpose.msra.mxu0 %v1059
        %1070 = vmatprep.subr.bf16.mxu0 0
        %1071 = vmatpush1.bf16.xpose.msra.mxu0 %v1060
        %1072 = vmatprep.subr.bf16.mxu0 0
        %1073 = vmatpush1.bf16.xpose.msra.mxu0 %v1061
        %1074 = vmatprep.subr.bf16.mxu0 0
        %1075 = vmatpush1.bf16.xpose.msra.mxu0 %v1062
        %1076 = vmatprep.subr.bf16.mxu0 0
        %1077 = vmatpush1.bf16.xpose.msra.mxu0 %v1063
        %1078 = vmatprep.subr.bf16.mxu0 0
        %1079 = vmatpush1.bf16.xpose.msra.mxu0 %v1064
        %1080 = vmatprep.subr.bf16.mxu0 0
        %1081 = vmatpush1.bf16.xpose.msra.mxu0 %v1065
        %1082 = vmatprep.subr.bf16.mxu0 0
        %1083 = vmatpush1.bf16.xpose.msra.mxu0 0
        %1084 = vmatprep.subr.bf16.mxu0 0
        %1085 = vmatpush1.bf16.xpose.msra.mxu0 0
        %1086 = vmatprep.subr.bf16.mxu0 0
        %1087 = vmatpush1.bf16.xpose.msra.mxu0 0
        %1088 = vmatprep.subr.bf16.mxu0 0
        %1089 = vmatpush1.bf16.xpose.msra.mxu0 0
        %1090 = vmatprep.subr.bf16.mxu0 0
        %1091 = vmatpush1.bf16.xpose.msra.mxu0 0
        %1092 = vmatprep.subr.bf16.mxu0 0
        %1093 = vmatpush1.bf16.xpose.msra.mxu0 0
        %1094 = vmatprep.subr.bf16.mxu0 0
        %1095 = vmatpush1.bf16.xpose.msra.mxu0 0
        %1096 = vmatprep.subr.bf16.mxu0 0
        %1097 = vmatpush1.bf16.xpose.msra.mxu0 0
        %1098 = vmatprep.mubr.bf16.mxu0 0
        %1099 = vmatmul.mubr.bf16.gmra.mrb[0].mxu0 %v1050
        %v1100 = vpop.f32.mrb[0].mxu0
        %v1101 = vadd.f32 0.0, %v1100
        %v1102 = vpop.f32.mrb[0].mxu0
        %v1103 = vpop.f32.mrb[0].mxu0
        %v1104 = vadd.f32 0.0, %v1103
        %v1105 = vpop.f32.mrb[0].mxu0
        %1106 = vmatprep.mubr.bf16.mxu0 0
        %1107 = vmatmul.mubr.bf16.gmra.mrb[0].mxu0 %v1051
        %v1108 = vpop.f32.mrb[0].mxu0
        %v1109 = vadd.f32 0.0, %v1108
        %v1110 = vpop.f32.mrb[0].mxu0
        %v1111 = vpop.f32.mrb[0].mxu0
        %v1112 = vadd.f32 0.0, %v1111
        %v1113 = vpop.f32.mrb[0].mxu0
        %1114 = vmatprep.mubr.bf16.mxu0 0
        %1115 = vmatmul.mubr.bf16.gmra.mrb[0].mxu0 %v1052
        %v1116 = vpop.f32.mrb[0].mxu0
        %v1117 = vadd.f32 0.0, %v1116
        %v1118 = vpop.f32.mrb[0].mxu0
        %v1119 = vpop.f32.mrb[0].mxu0
        %v1120 = vadd.f32 0.0, %v1119
        %v1121 = vpop.f32.mrb[0].mxu0
        %1122 = vmatprep.mubr.bf16.mxu0 0
        %1123 = vmatmul.mubr.bf16.gmra.mrb[0].mxu0 %v1053
        %v1124 = vpop.f32.mrb[0].mxu0
        %v1125 = vadd.f32 0.0, %v1124
        %v1126 = vpop.f32.mrb[0].mxu0
        %v1127 = vpop.f32.mrb[0].mxu0
        %v1128 = vadd.f32 0.0, %v1127
        %v1129 = vpop.f32.mrb[0].mxu0
        %1130 = vmatprep.mubr.bf16.mxu0 0
        %1131 = vmatmul.mubr.bf16.gmra.mrb[0].mxu0 %v1054
        %v1132 = vpop.f32.mrb[0].mxu0
        %v1133 = vadd.f32 0.0, %v1132
        %v1134 = vpop.f32.mrb[0].mxu0
        %v1135 = vpop.f32.mrb[0].mxu0
        %v1136 = vadd.f32 0.0, %v1135
        %v1137 = vpop.f32.mrb[0].mxu0
        %1138 = vmatprep.mubr.bf16.mxu0 0
        %1139 = vmatmul.mubr.bf16.gmra.mrb[0].mxu0 %v1055
        %v1140 = vpop.f32.mrb[0].mxu0
        %v1141 = vadd.f32 0.0, %v1140
        %v1142 = vpop.f32.mrb[0].mxu0
        %v1143 = vpop.f32.mrb[0].mxu0
        %v1144 = vadd.f32 0.0, %v1143
        %v1145 = vpop.f32.mrb[0].mxu0
        %1146 = vmatprep.mubr.bf16.mxu0 0
        %1147 = vmatmul.mubr.bf16.gmra.mrb[0].mxu0 %v1056
        %v1148 = vpop.f32.mrb[0].mxu0
        %v1149 = vadd.f32 0.0, %v1148
        %v1150 = vpop.f32.mrb[0].mxu0
        %v1151 = vpop.f32.mrb[0].mxu0
        %v1152 = vadd.f32 0.0, %v1151
        %v1153 = vpop.f32.mrb[0].mxu0
        %1154 = vmatprep.mubr.bf16.mxu0 0
        %1155 = vmatmul.mubr.bf16.gmra.mrb[0].mxu0 %v1057
        %v1156 = vpop.f32.mrb[0].mxu0
        %v1157 = vadd.f32 0.0, %v1156
        %v1158 = vpop.f32.mrb[0].mxu0
        %v1159 = vpop.f32.mrb[0].mxu0
        %v1160 = vadd.f32 0.0, %v1159
        %v1161 = vpop.f32.mrb[0].mxu0
        %1162 = vdwg.mxu0
        %v1163 = vtanh.pop %v1101
        %v1164 = vtanh.pop %v1104
        %v1165 = vtanh.pop %v1109
        %v1166 = vtanh.pop %v1112
        %v1167 = vtanh.pop %v1117
        %v1168 = vtanh.pop %v1120
        %v1169 = vtanh.pop %v1125
        %v1170 = vtanh.pop %v1128
        %v1171 = vtanh.pop %v1133
        %v1172 = vtanh.pop %v1136
        %v1173 = vtanh.pop %v1141
        %v1174 = vtanh.pop %v1144
        %v1175 = vtanh.pop %v1149
        %v1176 = vtanh.pop %v1152
        %v1177 = vtanh.pop %v1157
        %v1178 = vtanh.pop %v1160
        %v1179 = vmul.f32 %v1163, 6.0
        %v1180 = vmul.f32 %v1164, 6.0
        %v1181 = vmul.f32 %v1165, 6.0
        %v1182 = vmul.f32 %v1166, 6.0
        %v1183 = vmul.f32 %v1167, 6.0
        %v1184 = vmul.f32 %v1168, 6.0
        %v1185 = vmul.f32 %v1169, 6.0
        %v1186 = vmul.f32 %v1170, 6.0
        %v1187 = vmul.f32 %v1171, 6.0
        %v1188 = vmul.f32 %v1172, 6.0
        %v1189 = vmul.f32 %v1173, 6.0
        %v1190 = vmul.f32 %v1174, 6.0
        %v1191 = vmul.f32 %v1175, 6.0
        %v1192 = vmul.f32 %v1176, 6.0
        %v1193 = vmul.f32 %v1177, 6.0
        %v1194 = vmul.f32 %v1178, 6.0
        %v1195 = vld [vmem:[%s370] sm:$0xff]
        %v1196 = vld [vmem:[%s370 + $0x8] sm:$0xff]
        %v1197 = vld [vmem:[%s370 + $0x10] sm:$0xff]
        %v1198 = vld [vmem:[%s370 + $0x18] sm:$0xff]
        %v1199 = vld [vmem:[%s370 + $0x20] sm:$0xff]
        %v1200 = vld [vmem:[%s370 + $0x28] sm:$0xff]
        %v1201 = vld [vmem:[%s370 + $0x30] sm:$0xff]
        %v1202 = vld [vmem:[%s370 + $0x38] sm:$0xff]
        %v1203 = vld [vmem:[%s370 + $0x40] sm:$0xff]
        %v1204 = vld [vmem:[%s370 + $0x48] sm:$0xff]
        %v1205 = vld [vmem:[%s370 + $0x50] sm:$0xff]
        %v1206 = vld [vmem:[%s370 + $0x58] sm:$0xff]
        %v1207 = vld [vmem:[%s370 + $0x60] sm:$0xff]
        %v1208 = vld [vmem:[%s370 + $0x68] sm:$0xff]
        %v1209 = vld [vmem:[%s370 + $0x70] sm:$0xff]
        %v1210 = vld [vmem:[%s370 + $0x78] sm:$0xff]
        %vm1211 = vcmp.gt.f32.partialorder %v1195, 0.5
        %vm1212 = vcmp.gt.f32.partialorder %v1196, 0.5
        %vm1213 = vcmp.gt.f32.partialorder %v1197, 0.5
        %vm1214 = vcmp.gt.f32.partialorder %v1198, 0.5
        %vm1215 = vcmp.gt.f32.partialorder %v1199, 0.5
        %vm1216 = vcmp.gt.f32.partialorder %v1200, 0.5
        %vm1217 = vcmp.gt.f32.partialorder %v1201, 0.5
        %vm1218 = vcmp.gt.f32.partialorder %v1202, 0.5
        %vm1219 = vcmp.gt.f32.partialorder %v1203, 0.5
        %vm1220 = vcmp.gt.f32.partialorder %v1204, 0.5
        %vm1221 = vcmp.gt.f32.partialorder %v1205, 0.5
        %vm1222 = vcmp.gt.f32.partialorder %v1206, 0.5
        %vm1223 = vcmp.gt.f32.partialorder %v1207, 0.5
        %vm1224 = vcmp.gt.f32.partialorder %v1208, 0.5
        %vm1225 = vcmp.gt.f32.partialorder %v1209, 0.5
        %vm1226 = vcmp.gt.f32.partialorder %v1210, 0.5
        %v1227 = vld [vmem:[%s373] sm:$0x1]
        %vm1228 = vcmp.gt.f32.partialorder %v1227, 0.5
        %vm1229 = vmxor %vm1228, 1
        %v1230 = vsel %vm1211, 1, 0
        %v1231 = vsel %vm1212, 1, 0
        %v1232 = vsel %vm1213, 1, 0
        %v1233 = vsel %vm1214, 1, 0
        %v1234 = vsel %vm1215, 1, 0
        %v1235 = vsel %vm1216, 1, 0
        %v1236 = vsel %vm1217, 1, 0
        %v1237 = vsel %vm1218, 1, 0
        %v1238 = vsel %vm1219, 1, 0
        %v1239 = vsel %vm1220, 1, 0
        %v1240 = vsel %vm1221, 1, 0
        %v1241 = vsel %vm1222, 1, 0
        %v1242 = vsel %vm1223, 1, 0
        %v1243 = vsel %vm1224, 1, 0
        %v1244 = vsel %vm1225, 1, 0
        %v1245 = vsel %vm1226, 1, 0
        %1246 = vset.pattern.permute.xlu0 0
        %1247 = vperm.xlu0 %1246, %v1230
        %v1248 = vpop.permute.xlu0 %1247
        %1249 = vset.pattern.permute.xlu0 0
        %1250 = vperm.xlu0 %1249, %v1231
        %v1251 = vpop.permute.xlu0 %1250
        %1252 = vset.pattern.permute.xlu0 0
        %1253 = vperm.xlu0 %1252, %v1232
        %v1254 = vpop.permute.xlu0 %1253
        %1255 = vset.pattern.permute.xlu0 0
        %1256 = vperm.xlu0 %1255, %v1233
        %v1257 = vpop.permute.xlu0 %1256
        %1258 = vset.pattern.permute.xlu0 0
        %1259 = vperm.xlu0 %1258, %v1234
        %v1260 = vpop.permute.xlu0 %1259
        %1261 = vset.pattern.permute.xlu0 0
        %1262 = vperm.xlu0 %1261, %v1235
        %v1263 = vpop.permute.xlu0 %1262
        %1264 = vset.pattern.permute.xlu0 0
        %1265 = vperm.xlu0 %1264, %v1236
        %v1266 = vpop.permute.xlu0 %1265
        %1267 = vset.pattern.permute.xlu0 0
        %1268 = vperm.xlu0 %1267, %v1237
        %v1269 = vpop.permute.xlu0 %1268
        %1270 = vset.pattern.permute.xlu0 0
        %1271 = vperm.xlu0 %1270, %v1238
        %v1272 = vpop.permute.xlu0 %1271
        %1273 = vset.pattern.permute.xlu0 0
        %1274 = vperm.xlu0 %1273, %v1239
        %v1275 = vpop.permute.xlu0 %1274
        %1276 = vset.pattern.permute.xlu0 0
        %1277 = vperm.xlu0 %1276, %v1240
        %v1278 = vpop.permute.xlu0 %1277
        %1279 = vset.pattern.permute.xlu0 0
        %1280 = vperm.xlu0 %1279, %v1241
        %v1281 = vpop.permute.xlu0 %1280
        %1282 = vset.pattern.permute.xlu0 0
        %1283 = vperm.xlu0 %1282, %v1242
        %v1284 = vpop.permute.xlu0 %1283
        %1285 = vset.pattern.permute.xlu0 0
        %1286 = vperm.xlu0 %1285, %v1243
        %v1287 = vpop.permute.xlu0 %1286
        %1288 = vset.pattern.permute.xlu0 0
        %1289 = vperm.xlu0 %1288, %v1244
        %v1290 = vpop.permute.xlu0 %1289
        %1291 = vset.pattern.permute.xlu0 0
        %1292 = vperm.xlu0 %1291, %v1245
        %v1293 = vpop.permute.xlu0 %1292
        %vm1294 = vcmp.eq.s32.totalorder %v1248, 1
        %vm1295 = vcmp.eq.s32.totalorder %v1251, 1
        %vm1296 = vcmp.eq.s32.totalorder %v1254, 1
        %vm1297 = vcmp.eq.s32.totalorder %v1257, 1
        %vm1298 = vcmp.eq.s32.totalorder %v1260, 1
        %vm1299 = vcmp.eq.s32.totalorder %v1263, 1
        %vm1300 = vcmp.eq.s32.totalorder %v1266, 1
        %vm1301 = vcmp.eq.s32.totalorder %v1269, 1
        %vm1302 = vcmp.eq.s32.totalorder %v1272, 1
        %vm1303 = vcmp.eq.s32.totalorder %v1275, 1
        %vm1304 = vcmp.eq.s32.totalorder %v1278, 1
        %vm1305 = vcmp.eq.s32.totalorder %v1281, 1
        %vm1306 = vcmp.eq.s32.totalorder %v1284, 1
        %vm1307 = vcmp.eq.s32.totalorder %v1287, 1
        %vm1308 = vcmp.eq.s32.totalorder %v1290, 1
        %vm1309 = vcmp.eq.s32.totalorder %v1293, 1
        %v1310 = vsel %vm1229, 1, 0
        %v1311 = vlaneseq
        %v1312 = vshrl.u32 %v1311, 7
        %v1313 = vsub.s32 0, %v1312
        %v1314 = vrot.slane %v1310, %v1313
        %vm1315 = vcmp.eq.s32.totalorder %v1314, 1
        %vm1316 = vmand %vm1294, %vm1315
        %vm1317 = vmand %vm1295, %vm1315
        %vm1318 = vmand %vm1296, %vm1315
        %vm1319 = vmand %vm1297, %vm1315
        %vm1320 = vmand %vm1298, %vm1315
        %vm1321 = vmand %vm1299, %vm1315
        %vm1322 = vmand %vm1300, %vm1315
        %vm1323 = vmand %vm1301, %vm1315
        %vm1324 = vmand %vm1302, %vm1315
        %vm1325 = vmand %vm1303, %vm1315
        %vm1326 = vmand %vm1304, %vm1315
        %vm1327 = vmand %vm1305, %vm1315
        %vm1328 = vmand %vm1306, %vm1315
        %vm1329 = vmand %vm1307, %vm1315
        %vm1330 = vmand %vm1308, %vm1315
        %vm1331 = vmand %vm1309, %vm1315
        %v1332 = vsel %vm1316, %v1179, -inf
        %v1333 = vsel %vm1317, %v1180, -inf
        %v1334 = vsel %vm1318, %v1181, -inf
        %v1335 = vsel %vm1319, %v1182, -inf
        %v1336 = vsel %vm1320, %v1183, -inf
        %v1337 = vsel %vm1321, %v1184, -inf
        %v1338 = vsel %vm1322, %v1185, -inf
        %v1339 = vsel %vm1323, %v1186, -inf
        %v1340 = vsel %vm1324, %v1187, -inf
        %v1341 = vsel %vm1325, %v1188, -inf
        %v1342 = vsel %vm1326, %v1189, -inf
        %v1343 = vsel %vm1327, %v1190, -inf
        %v1344 = vsel %vm1328, %v1191, -inf
        %v1345 = vsel %vm1329, %v1192, -inf
        %v1346 = vsel %vm1330, %v1193, -inf
        %v1347 = vsel %vm1331, %v1194, -inf
        %1348 = vmax.xlane.f32.xlu0 %v1332
        %v1349 = vpop.xlane.xlu0 %1348
        %1350 = vmax.xlane.f32.xlu0 %v1333
        %v1351 = vpop.xlane.xlu0 %1350
        %1352 = vmax.xlane.f32.xlu0 %v1334
        %v1353 = vpop.xlane.xlu0 %1352
        %1354 = vmax.xlane.f32.xlu0 %v1335
        %v1355 = vpop.xlane.xlu0 %1354
        %1356 = vmax.xlane.f32.xlu0 %v1336
        %v1357 = vpop.xlane.xlu0 %1356
        %1358 = vmax.xlane.f32.xlu0 %v1337
        %v1359 = vpop.xlane.xlu0 %1358
        %1360 = vmax.xlane.f32.xlu0 %v1338
        %v1361 = vpop.xlane.xlu0 %1360
        %1362 = vmax.xlane.f32.xlu0 %v1339
        %v1363 = vpop.xlane.xlu0 %1362
        %1364 = vmax.xlane.f32.xlu0 %v1340
        %v1365 = vpop.xlane.xlu0 %1364
        %1366 = vmax.xlane.f32.xlu0 %v1341
        %v1367 = vpop.xlane.xlu0 %1366
        %1368 = vmax.xlane.f32.xlu0 %v1342
        %v1369 = vpop.xlane.xlu0 %1368
        %1370 = vmax.xlane.f32.xlu0 %v1343
        %v1371 = vpop.xlane.xlu0 %1370
        %1372 = vmax.xlane.f32.xlu0 %v1344
        %v1373 = vpop.xlane.xlu0 %1372
        %1374 = vmax.xlane.f32.xlu0 %v1345
        %v1375 = vpop.xlane.xlu0 %1374
        %1376 = vmax.xlane.f32.xlu0 %v1346
        %v1377 = vpop.xlane.xlu0 %1376
        %1378 = vmax.xlane.f32.xlu0 %v1347
        %v1379 = vpop.xlane.xlu0 %1378
        %v1380 = vmax.f32 %v1349, %v1357
        %v1381 = vmax.f32 %v1351, %v1359
        %v1382 = vmax.f32 %v1353, %v1361
        %v1383 = vmax.f32 %v1355, %v1363
        %v1384 = vmax.f32 %v1380, %v1365
        %v1385 = vmax.f32 %v1381, %v1367
        %v1386 = vmax.f32 %v1382, %v1369
        %v1387 = vmax.f32 %v1383, %v1371
        %v1388 = vmax.f32 %v1384, %v1373
        %v1389 = vmax.f32 %v1385, %v1375
        %v1390 = vmax.f32 %v1386, %v1377
        %v1391 = vmax.f32 %v1387, %v1379
        %v1392 = vmax.f32 %v1388, %v1389
        %v1393 = vmax.f32 %v1390, %v1391
        %v1394 = vmax.f32 %v1392, %v1393
        %v1395 = vrot.slane %v1394, 4
        %v1396 = vmax.f32 %v1394, %v1395
        %v1397 = vrot.slane %v1396, 2
        %v1398 = vmax.f32 %v1396, %v1397
        %v1399 = vrot.slane %v1398, 1
        %v1400 = vmax.f32 %v1398, %v1399
        %v1401 = vsub.f32 %v1332, %v1400
        %v1402 = vsub.f32 %v1333, %v1400
        %v1403 = vsub.f32 %v1334, %v1400
        %v1404 = vsub.f32 %v1335, %v1400
        %v1405 = vsub.f32 %v1336, %v1400
        %v1406 = vsub.f32 %v1337, %v1400
        %v1407 = vsub.f32 %v1338, %v1400
        %v1408 = vsub.f32 %v1339, %v1400
        %v1409 = vsub.f32 %v1340, %v1400
        %v1410 = vsub.f32 %v1341, %v1400
        %v1411 = vsub.f32 %v1342, %v1400
        %v1412 = vsub.f32 %v1343, %v1400
        %v1413 = vsub.f32 %v1344, %v1400
        %v1414 = vsub.f32 %v1345, %v1400
        %v1415 = vsub.f32 %v1346, %v1400
        %v1416 = vsub.f32 %v1347, %v1400
        %v1417 = vmul.f32 %v1401, 1.442695
        %v1418 = vpow.pop %v1417
        %v1419 = vmul.f32 %v1402, 1.442695
        %v1420 = vpow.pop %v1419
        %v1421 = vmul.f32 %v1403, 1.442695
        %v1422 = vpow.pop %v1421
        %v1423 = vmul.f32 %v1404, 1.442695
        %v1424 = vpow.pop %v1423
        %v1425 = vmul.f32 %v1405, 1.442695
        %v1426 = vpow.pop %v1425
        %v1427 = vmul.f32 %v1406, 1.442695
        %v1428 = vpow.pop %v1427
        %v1429 = vmul.f32 %v1407, 1.442695
        %v1430 = vpow.pop %v1429
        %v1431 = vmul.f32 %v1408, 1.442695
        %v1432 = vpow.pop %v1431
        %v1433 = vmul.f32 %v1409, 1.442695
        %v1434 = vpow.pop %v1433
        %v1435 = vmul.f32 %v1410, 1.442695
        %v1436 = vpow.pop %v1435
        %v1437 = vmul.f32 %v1411, 1.442695
        %v1438 = vpow.pop %v1437
        %v1439 = vmul.f32 %v1412, 1.442695
        %v1440 = vpow.pop %v1439
        %v1441 = vmul.f32 %v1413, 1.442695
        %v1442 = vpow.pop %v1441
        %v1443 = vmul.f32 %v1414, 1.442695
        %v1444 = vpow.pop %v1443
        %v1445 = vmul.f32 %v1415, 1.442695
        %v1446 = vpow.pop %v1445
        %v1447 = vmul.f32 %v1416, 1.442695
        %v1448 = vpow.pop %v1447
        %1449 = vadd.xlane.f32.xlu0 %v1418
        %v1450 = vpop.xlane.xlu0 %1449
        %1451 = vadd.xlane.f32.xlu0 %v1420
        %v1452 = vpop.xlane.xlu0 %1451
        %1453 = vadd.xlane.f32.xlu0 %v1422
        %v1454 = vpop.xlane.xlu0 %1453
        %1455 = vadd.xlane.f32.xlu0 %v1424
        %v1456 = vpop.xlane.xlu0 %1455
        %1457 = vadd.xlane.f32.xlu0 %v1426
        %v1458 = vpop.xlane.xlu0 %1457
        %1459 = vadd.xlane.f32.xlu0 %v1428
        %v1460 = vpop.xlane.xlu0 %1459
        %1461 = vadd.xlane.f32.xlu0 %v1430
        %v1462 = vpop.xlane.xlu0 %1461
        %1463 = vadd.xlane.f32.xlu0 %v1432
        %v1464 = vpop.xlane.xlu0 %1463
        %1465 = vadd.xlane.f32.xlu0 %v1434
        %v1466 = vpop.xlane.xlu0 %1465
        %1467 = vadd.xlane.f32.xlu0 %v1436
        %v1468 = vpop.xlane.xlu0 %1467
        %1469 = vadd.xlane.f32.xlu0 %v1438
        %v1470 = vpop.xlane.xlu0 %1469
        %1471 = vadd.xlane.f32.xlu0 %v1440
        %v1472 = vpop.xlane.xlu0 %1471
        %1473 = vadd.xlane.f32.xlu0 %v1442
        %v1474 = vpop.xlane.xlu0 %1473
        %1475 = vadd.xlane.f32.xlu0 %v1444
        %v1476 = vpop.xlane.xlu0 %1475
        %1477 = vadd.xlane.f32.xlu0 %v1446
        %v1478 = vpop.xlane.xlu0 %1477
        %1479 = vadd.xlane.f32.xlu0 %v1448
        %v1480 = vpop.xlane.xlu0 %1479
        %v1481 = vadd.f32 %v1450, %v1452
        %v1482 = vadd.f32 %v1481, %v1454
        %v1483 = vadd.f32 %v1482, %v1456
        %v1484 = vadd.f32 %v1483, %v1458
        %v1485 = vadd.f32 %v1484, %v1460
        %v1486 = vadd.f32 %v1485, %v1462
        %v1487 = vadd.f32 %v1486, %v1464
        %v1488 = vadd.f32 %v1487, %v1466
        %v1489 = vadd.f32 %v1488, %v1468
        %v1490 = vadd.f32 %v1489, %v1470
        %v1491 = vadd.f32 %v1490, %v1472
        %v1492 = vadd.f32 %v1491, %v1474
        %v1493 = vadd.f32 %v1492, %v1476
        %v1494 = vadd.f32 %v1493, %v1478
        %v1495 = vadd.f32 %v1494, %v1480
        %v1496 = vrot.slane %v1495, 4
        %v1497 = vadd.f32 %v1495, %v1496
        %v1498 = vrot.slane %v1497, 2
        %v1499 = vadd.f32 %v1497, %v1498
        %v1500 = vrot.slane %v1499, 1
        %v1501 = vadd.f32 %v1499, %v1500
        %v1502 = vlog2.pop %v1501
        %v1503 = vmul.f32 %v1502, 0.6931472
        %v1504 = vadd.f32 %v1400, %v1503
        %v1505 = vsub.f32 %v1332, %v1504
        %v1506 = vsub.f32 %v1333, %v1504
        %v1507 = vsub.f32 %v1334, %v1504
        %v1508 = vsub.f32 %v1335, %v1504
        %v1509 = vsub.f32 %v1336, %v1504
        %v1510 = vsub.f32 %v1337, %v1504
        %v1511 = vsub.f32 %v1338, %v1504
        %v1512 = vsub.f32 %v1339, %v1504
        %v1513 = vsub.f32 %v1340, %v1504
        %v1514 = vsub.f32 %v1341, %v1504
        %v1515 = vsub.f32 %v1342, %v1504
        %v1516 = vsub.f32 %v1343, %v1504
        %v1517 = vsub.f32 %v1344, %v1504
        %v1518 = vsub.f32 %v1345, %v1504
        %v1519 = vsub.f32 %v1346, %v1504
        %v1520 = vsub.f32 %v1347, %v1504
        %1521 = vst [vmem:[%s355] sm:$0xff] %v1505
        %1522 = vst [vmem:[%s355 + $0x8] sm:$0xff] %v1506
        %1523 = vst [vmem:[%s355 + $0x10] sm:$0xff] %v1507
        %1524 = vst [vmem:[%s355 + $0x18] sm:$0xff] %v1508
        %1525 = vst [vmem:[%s355 + $0x20] sm:$0xff] %v1509
        %1526 = vst [vmem:[%s355 + $0x28] sm:$0xff] %v1510
        %1527 = vst [vmem:[%s355 + $0x30] sm:$0xff] %v1511
        %1528 = vst [vmem:[%s355 + $0x38] sm:$0xff] %v1512
        %1529 = vst [vmem:[%s355 + $0x40] sm:$0xff] %v1513
        %1530 = vst [vmem:[%s355 + $0x48] sm:$0xff] %v1514
        %1531 = vst [vmem:[%s355 + $0x50] sm:$0xff] %v1515
        %1532 = vst [vmem:[%s355 + $0x58] sm:$0xff] %v1516
        %1533 = vst [vmem:[%s355 + $0x60] sm:$0xff] %v1517
        %1534 = vst [vmem:[%s355 + $0x68] sm:$0xff] %v1518
        %1535 = vst [vmem:[%s355 + $0x70] sm:$0xff] %v1519
        %1536 = vst [vmem:[%s355 + $0x78] sm:$0xff] %v1520
        %vm1537 = vcmask 0
        %1538 = vst.msk [vmem:[%s376] sm:$0x1] %vm1537, %v1504
        %s1539 = sand.u32 %s195, 1
        %s1540 = scalar_lea.sflag [#allocation4], %s1539
        %s1541 = sand.u32 %s195, 1
        %s1542 = smul.addr %s1541, 128
        %s1543 = scalar_lea.vmem [#allocation7], %s1542
        %p1544 = scmp.lt.s32.totalorder %s25, 1
        %s1545 = scalar_select %p1544, %s25, 1
        %s1546 = scalar_lea.vmem %s8, %s1545
        // Predicated region
        $region57: #{tpu_custom_call.1} parent=47 // pred_check
          %p1547 = pneg %p205
        $region58: #{tpu_custom_call.1} parent=47 // pred_check_branch
          %1549 = sbr.rel (%p1547) target = $region60
        $region59: #{tpu_custom_call.1} parent=47 // pred_region
          %s1551 = ssub.s32 2048, 2048
          %1552 = vsyncadd %s1540, %s1551
          %s1553 = smul.addr %s25, 16
          %s1554 = smul.addr %s1553, 128
          %s1555 = scalar_lea.hbm %s7, %s1554
          %s1556 = sshll.u32 %s1543, 4
          %s1557 = int_to_ptr.vmem [resolvable:$true] %s1556
          %1562 = dma.vmem_to_hbm [thread:$0]  %s1557, 2048, %s1555, %s1540, 128, 128, 8
        $region60: #{tpu_custom_call.1} parent=47 // pred_fallthru
          _
        // Predicated region
        $region61: #{tpu_custom_call.1} parent=47 // pred_check
          %p1563 = pneg %p231
        $region62: #{tpu_custom_call.1} parent=47 // pred_check_branch
          %1565 = sbr.rel (%p1563) target = $region64
        $region63: #{tpu_custom_call.1} parent=47 // pred_region
          _
        $region64: #{tpu_custom_call.1} parent=47 // pred_fallthru
          _
      $region48: #{tpu_custom_call.1} parent=5 // pred_fallthru
        _
      %p1566 = scmp.le.s32.totalorder 2, %s20
      // Predicated region
      $region65: #{tpu_custom_call.1} parent=5 // pred_check
        %p1567 = pneg %p1566
      $region66: #{tpu_custom_call.1} parent=5 // pred_check_branch
        %1569 = sbr.rel (%p1567) target = $region68
      $region67: #{tpu_custom_call.1} parent=5 // pred_region
        %s1570 = ssub.s32 %s20, 2
        // Predicated region
        $region69: #{tpu_custom_call.1} parent=67 // pred_check
          %p1571 = pneg %p211
        $region70: #{tpu_custom_call.1} parent=67 // pred_check_branch
          %1573 = sbr.rel (%p1571) target = $region72
        $region71: #{tpu_custom_call.1} parent=67 // pred_region
          %s1574 = sand.u32 %s196, 1
          %s1575 = scalar_lea.sflag [#allocation4], %s1574
          %s1576 = sand.u32 %s196, 1
          %s1577 = smul.addr %s1576, 128
          %s1578 = scalar_lea.vmem [#allocation7], %s1577
          %1579 = dma.done %s1575, 2048
        $region72: #{tpu_custom_call.1} parent=67 // pred_fallthru
          _
        // Predicated region
        $region73: #{tpu_custom_call.1} parent=67 // pred_check
          %p1580 = pneg %p237
        $region74: #{tpu_custom_call.1} parent=67 // pred_check_branch
          %1582 = sbr.rel (%p1580) target = $region76
        $region75: #{tpu_custom_call.1} parent=67 // pred_region
          %p1583 = scmp.lt.s32.totalorder %s26, 1
          %s1584 = scalar_select %p1583, %s26, 1
          %s1585 = scalar_lea.vmem %s8, %s1584
        $region76: #{tpu_custom_call.1} parent=67 // pred_fallthru
          _
      $region68: #{tpu_custom_call.1} parent=5 // pred_fallthru
        _
    $region6: #{tpu_custom_call.1} parent=1 // loop_footer
      %s24 = sadd.s32 1, %s20
    $region7: #{tpu_custom_call.1} parent=1 // loop_footer_branch
      %19 = sbr.rel target = $region3
    $region8: #{tpu_custom_call.1} parent=1 // loop_exit
      _
    %1586 = vsyncpa [#allocation3], 1
    %s1587 = scalar_lea.sflag [#allocation3], 1
    %1588 = vsyncpa %s1587, 1
    %1589 = vsyncpa [#allocation6], 1
    %1590 = vsyncpa [#allocation4], 1
    %s1591 = scalar_lea.sflag [#allocation4], 1
    %1592 = vsyncpa %s1591, 1

</llo_original>
